<compile_context>
chip_gen: v5e
topology: v5e:2x2
jax: 0.10.0
libtpu: 0.0.40
codegen_flags: <defaults>
</compile_context>

<pallas_src>
import jax
import jax.numpy as jnp
import numpy as np
from jax.experimental import pallas as pl
from jax.experimental.pallas import tpu as pltpu

_KH = _KW = 5
_PAD = 2
_H1 = _W1 = 32          # conv1 spatial size
_C1 = 6                 # conv1 out channels
_C1S = 8                # conv1 channel slot width (padded to 8 lanes / column)
_H2 = _W2 = 16          # conv2 spatial size (after pool1)
_C2 = 16                # conv2 out channels
_LANE = 128
_NH1, _NH2, _NOUT = 120, 84, 10


# ----------------------------------------------------------------------------
# Fused forward kernel
# ----------------------------------------------------------------------------
def _lenet_kernel(x_ref, w1_ref, b1_ref, w2_ref, b2_ref,
                  wf1_ref, bf1_ref, wf2_ref, bf2_ref, wf3_ref, bf3_ref,
                  out_ref, xh_ref, ph_ref):
    TB = x_ref.shape[0]
    f32 = jnp.float32

    def conv_relu_pool(src_ref, w_ref, b_ref, H):
        # 5x5 "same" conv as 5 banded-Toeplitz MXU matmuls (one per kernel
        # row dy), fused bias + relu, then the 2x2 max-pool: even-x / odd-x
        # outputs live in separate 128-lane blocks so the x-max is a
        # vreg-aligned lane-slice max, and the y-max is a row-pair max.
        K = src_ref.shape[2]
        acc = jnp.zeros((TB * H, 2 * _LANE), f32)
        for dy in range(_KH):
            slab = src_ref[:, dy:dy + H, :].reshape(TB * H, K)
            acc = acc + jnp.dot(slab, w_ref[dy], preferred_element_type=f32)
        act = jnp.maximum(acc + b_ref[...], 0.0)               # (TB*H, 256)
        xmax = jnp.maximum(act[:, :_LANE], act[:, _LANE:])     # (TB*H, 128)
        rows = xmax.reshape(TB * (H // 2), 2, _LANE)
        return jnp.maximum(rows[:, 0, :], rows[:, 1, :])       # (TB*H//2, 128)

    # ---- conv1 + relu + pool (halo-only zeroing of the padded input) -------
    xh_ref[:, :_PAD, :] = jnp.zeros((TB, _PAD, _W1), f32)
    xh_ref[:, _PAD + _H1:, :] = jnp.zeros((TB, _PAD, _W1), f32)
    xh_ref[:, _PAD:_PAD + _H1, :] = x_ref[...]
    p1 = conv_relu_pool(xh_ref, w1_ref, b1_ref, _H1)           # (TB*16, 128)

    # ---- conv2 + relu + pool ------------------------------------------------
    ph_ref[:, :_PAD, :] = jnp.zeros((TB, _PAD, _LANE), f32)
    ph_ref[:, _PAD + _H2:, :] = jnp.zeros((TB, _PAD, _LANE), f32)
    ph_ref[:, _PAD:_PAD + _H2, :] = p1.reshape(TB, _H2, _LANE)
    p2 = conv_relu_pool(ph_ref, w2_ref, b2_ref, _H2)           # (TB*8, 128)

    # ---- fc1: flatten folded into wf1, 8 accumulated (TB,128)x(128,128) ----
    r = p2.reshape(TB, _H2 // 2, _LANE)                        # 1 vreg / sample
    acc = jnp.zeros((TB, _LANE), f32)
    for h in range(_H2 // 2):
        acc = acc + jnp.dot(r[:, h, :], wf1_ref[h],
                            preferred_element_type=f32)
    h1 = jnp.maximum(acc + bf1_ref[...], 0.0)

    # ---- fc2 -> relu -> fc3 (128-lane padded; wrapper slices to 10) --------
    h2 = jnp.maximum(jnp.dot(h1, wf2_ref[...], preferred_element_type=f32)
                     + bf2_ref[...], 0.0)
    out_ref[...] = (jnp.dot(h2, wf3_ref[...], preferred_element_type=f32)
                    + bf3_ref[...])
    # TODO(synk): the reference module's print(x.size()) debug statements are
    # intentionally not reproduced.


# ----------------------------------------------------------------------------
# One-time layout conversion: PyTorch params -> banded, lane-dense kernel
# layout (host-side numpy; not jitted).
# ----------------------------------------------------------------------------
def prepare_params(p):
    cp = lambda a: np.asarray(jax.device_get(a), dtype=np.float32)

    # conv1 banded weights: (5, 32, 256)
    #   input lane  : unpadded x_in in [0, 32)
    #   output lane : 128*(x % 2) + (x // 2)*8 + co   (even-x | odd-x blocks)
    w1, b1 = cp(p["conv1_w"]), cp(p["conv1_b"])
    W1 = np.zeros((_KH, _W1, 2 * _LANE), np.float32)
    B1 = np.zeros((1, 2 * _LANE), np.float32)
    for x in range(_W1):
        o = _LANE * (x % 2) + (x // 2) * _C1S
        B1[0, o:o + _C1] = b1
        for dy in range(_KH):
            for dx in range(_KW):
                i = x + dx - _PAD
                if 0 <= i < _W1:
                    W1[dy, i, o:o + _C1] = w1[:, 0, dy, dx]

    # conv2 banded weights: (5, 128, 256)
    #   input lane  : w*8 + ci   (pool1 layout; ci slots 6,7 are zero)
    #   output lane : 128*(x % 2) + (x // 2)*16 + co
    w2, b2 = cp(p["conv2_w"]), cp(p["conv2_b"])
    W2 = np.zeros((_KH, _LANE, 2 * _LANE), np.float32)
    B2 = np.zeros((1, 2 * _LANE), np.float32)
    for x in range(_W2):
        o = _LANE * (x % 2) + (x // 2) * _C2
        B2[0, o:o + _C2] = b2
        for dy in range(_KH):
            for dx in range(_KW):
                i = x + dx - _PAD
                if 0 <= i < _W2:
                    W2[dy, i * _C1S:i * _C1S + _C1, o:o + _C2] = \
                        w2[:, :, dy, dx].T

    # fc1: flatten folded into the weight.  Block h has rows (w*16 + c) that
    # map to PyTorch flat feature c*64 + h*8 + w; columns zero-padded to 128.
    f1 = cp(p["fc1_w"])                                        # (120, 1024)
    WF1 = np.zeros((_H2 // 2, _LANE, _LANE), np.float32)
    for h in range(_H2 // 2):
        for w in range(_W2 // 2):
            for c in range(_C2):
                WF1[h, w * _C2 + c, :_NH1] = f1[:, c * 64 + h * 8 + w]
    BF1 = np.zeros((1, _LANE), np.float32)
    BF1[0, :_NH1] = cp(p["fc1_b"])

    WF2 = np.zeros((_LANE, _LANE), np.float32)
    WF2[:_NH1, :_NH2] = cp(p["fc2_w"]).T
    BF2 = np.zeros((1, _LANE), np.float32)
    BF2[0, :_NH2] = cp(p["fc2_b"])
    WF3 = np.zeros((_LANE, _LANE), np.float32)
    WF3[:_NH2, :_NOUT] = cp(p["fc3_w"]).T
    BF3 = np.zeros((1, _LANE), np.float32)
    BF3[0, :_NOUT] = cp(p["fc3_b"])

    j = jnp.asarray
    return {"w1": j(W1), "b1": j(B1), "w2": j(W2), "b2": j(B2),
            "wf1": j(WF1), "bf1": j(BF1), "wf2": j(WF2), "bf2": j(BF2),
            "wf3": j(WF3), "bf3": j(BF3)}


# ----------------------------------------------------------------------------
# Wrapper
# ----------------------------------------------------------------------------
def _pick_tb(batch):
    # 8-sample batch tiles when the batch allows it (keeps the output block
    # sublane-aligned and bounds per-step scratch); otherwise one block.
    return 8 if batch % 8 == 0 else batch


@jax.jit
def net_forward(x_nchw, kp):
    B = x_nchw.shape[0]
    TB = _pick_tb(B)
    x = x_nchw.reshape(B, _H1, _W1).astype(jnp.float32)   # Cin == 1: free reshape

    weights = (kp["w1"], kp["b1"], kp["w2"], kp["b2"],
               kp["wf1"], kp["bf1"], kp["wf2"], kp["bf2"],
               kp["wf3"], kp["bf3"])

    def full_spec(a):
        nd = a.ndim
        return pl.BlockSpec(a.shape, lambda i, _nd=nd: (0,) * _nd)

    out128 = pl.pallas_call(
        _lenet_kernel,
        out_shape=jax.ShapeDtypeStruct((B, _LANE), jnp.float32),
        grid=(B // TB,),
        in_specs=[pl.BlockSpec((TB, _H1, _W1), lambda i: (i, 0, 0))]
                 + [full_spec(w) for w in weights],
        out_specs=pl.BlockSpec((TB, _LANE), lambda i: (i, 0)),
        scratch_shapes=[
            pltpu.VMEM((TB, _H1 + 2 * _PAD, _W1), jnp.float32),    # padded conv1 in
            pltpu.VMEM((TB, _H2 + 2 * _PAD, _LANE), jnp.float32),  # padded conv2 in
        ],
        compiler_params=pltpu.CompilerParams(
            dimension_semantics=("parallel",)),
    )(x, *weights)
    # Kernel emits a lane-dense (B, 128) tile; the logits are the first 10 lanes.
    return out128[:, :_NOUT]


# ----------------------------------------------------------------------------
# Pure-JAX reference (PyTorch semantics) for correctness checking.
# ----------------------------------------------------------------------------
def net_reference(x_nchw, p):
    def conv(x, w, b):
        dn = jax.lax.conv_dimension_numbers(x.shape, w.shape,
                                            ("NCHW", "OIHW", "NCHW"))
        y = jax.lax.conv_general_dilated(x, w, (1, 1), ((2, 2), (2, 2)),
                                         dimension_numbers=dn)
        return jax.nn.relu(y + b[None, :, None, None])

    def pool(x):
        return jax.lax.reduce_window(x, -jnp.inf, jax.lax.max,
                                     (1, 1, 2, 2), (1, 1, 2, 2), "VALID")

    B = x_nchw.shape[0]
    x = pool(conv(x_nchw, p["conv1_w"], p["conv1_b"]))
    x = pool(conv(x, p["conv2_w"], p["conv2_b"]))
    x = x.reshape(B, -1)
    x = jax.nn.relu(x @ p["fc1_w"].T + p["fc1_b"])
    x = jax.nn.relu(x @ p["fc2_w"].T + p["fc2_b"])
    return x @ p["fc3_w"].T + p["fc3_b"]


def init_params(key):
    ks = jax.random.split(key, 10)
    n = lambda k, s, scale: (scale * jax.random.normal(k, s)).astype(jnp.float32)
    return {
        "conv1_w": n(ks[0], (6, 1, 5, 5), 0.2),
        "conv1_b": n(ks[1], (6,), 0.1),
        "conv2_w": n(ks[2], (16, 6, 5, 5), 0.08),
        "conv2_b": n(ks[3], (16,), 0.1),
        "fc1_w": n(ks[4], (120, 16 * 8 * 8), 0.03),
        "fc1_b": n(ks[5], (120,), 0.1),
        "fc2_w": n(ks[6], (84, 120), 0.09),
        "fc2_b": n(ks[7], (84,), 0.1),
        "fc3_w": n(ks[8], (10, 84), 0.1),
        "fc3_b": n(ks[9], (10,), 0.1),
    }


if __name__ == "__main__":
    key = jax.random.PRNGKey(0)
    pkey, xkey = jax.random.split(key)
    params = init_params(pkey)
    # fc1 expects 16*8*8 features => 32x32 single-channel input.
    x = jax.random.normal(xkey, (2, 1, 32, 32), dtype=jnp.float32)

    kparams = prepare_params(params)            # one-time host-side layout prep
    out = jax.block_until_ready(net_forward(x, kparams))
    assert out.shape == (2, 10), out.shape

    ref = jax.block_until_ready(net_reference(x, params))
    assert jnp.allclose(out, ref, rtol=1e-3, atol=2e-3), (
        float(jnp.max(jnp.abs(out - ref))))

    print("KERNEL_OK")
</pallas_src>

<mosaic_0001>
module attributes {stable_mosaic.version = 11 : i64} {
  func.func @_lenet_kernel(%arg0: i32, %arg1: memref<2x32x32xf32, #tpu.memory_space<vmem>>, %arg2: memref<5x32x256xf32, #tpu.memory_space<vmem>>, %arg3: memref<1x256xf32, #tpu.memory_space<vmem>>, %arg4: memref<5x128x256xf32, #tpu.memory_space<vmem>>, %arg5: memref<1x256xf32, #tpu.memory_space<vmem>>, %arg6: memref<8x128x128xf32, #tpu.memory_space<vmem>>, %arg7: memref<1x128xf32, #tpu.memory_space<vmem>>, %arg8: memref<128x128xf32, #tpu.memory_space<vmem>>, %arg9: memref<1x128xf32, #tpu.memory_space<vmem>>, %arg10: memref<128x128xf32, #tpu.memory_space<vmem>>, %arg11: memref<1x128xf32, #tpu.memory_space<vmem>>, %arg12: memref<2x128xf32, #tpu.memory_space<vmem>>, %arg13: memref<2x36x32xf32, #tpu.memory_space<vmem>>, %arg14: memref<2x20x128xf32, #tpu.memory_space<vmem>>) attributes {dimension_semantics = [#tpu.dimension_semantics<parallel>], iteration_bounds = array<i64: 1>, scalar_prefetch = 0 : i64, scratch_operands = 2 : i64, tpu.core_type = #tpu.core_type<tc>, window_params = [{transform_indices = @transform_0, window_bounds = array<i64: 2, 32, 32>}, {pipeline_mode = #tpu.pipeline_mode<synchronous>, transform_indices = @transform_1, window_bounds = array<i64: 5, 32, 256>}, {pipeline_mode = #tpu.pipeline_mode<synchronous>, transform_indices = @transform_2, window_bounds = array<i64: 1, 256>}, {pipeline_mode = #tpu.pipeline_mode<synchronous>, transform_indices = @transform_3, window_bounds = array<i64: 5, 128, 256>}, {pipeline_mode = #tpu.pipeline_mode<synchronous>, transform_indices = @transform_4, window_bounds = array<i64: 1, 256>}, {pipeline_mode = #tpu.pipeline_mode<synchronous>, transform_indices = @transform_5, window_bounds = array<i64: 8, 128, 128>}, {pipeline_mode = #tpu.pipeline_mode<synchronous>, transform_indices = @transform_6, window_bounds = array<i64: 1, 128>}, {pipeline_mode = #tpu.pipeline_mode<synchronous>, transform_indices = @transform_7, window_bounds = array<i64: 128, 128>}, {pipeline_mode = #tpu.pipeline_mode<synchronous>, transform_indices = @transform_8, window_bounds = array<i64: 1, 128>}, {pipeline_mode = #tpu.pipeline_mode<synchronous>, transform_indices = @transform_9, window_bounds = array<i64: 128, 128>}, {pipeline_mode = #tpu.pipeline_mode<synchronous>, transform_indices = @transform_10, window_bounds = array<i64: 1, 128>}, {transform_indices = @transform_11, window_bounds = array<i64: 2, 128>}]} {
    %cst = arith.constant 0.000000e+00 : f32
    %0 = vector.broadcast %cst : f32 to vector<2x2x32xf32>
    %c0 = arith.constant 0 : index
    %c0_0 = arith.constant 0 : index
    %c0_1 = arith.constant 0 : index
    %1 = vector.load %arg13[%c0, %c0_0, %c0_1] : memref<2x36x32xf32, #tpu.memory_space<vmem>>, vector<2x2x32xf32>
    tpu.vector_store %arg13[%c0, %c0_0, %c0_1], %0 {strides = array<i32>} : memref<2x36x32xf32, #tpu.memory_space<vmem>>, vector<2x2x32xf32>,
    %cst_2 = arith.constant 0.000000e+00 : f32
    %2 = vector.broadcast %cst_2 : f32 to vector<2x2x32xf32>
    %c0_3 = arith.constant 0 : index
    %c34 = arith.constant 34 : index
    %c0_4 = arith.constant 0 : index
    %3 = vector.load %arg13[%c0_3, %c34, %c0_4] : memref<2x36x32xf32, #tpu.memory_space<vmem>>, vector<2x2x32xf32>
    tpu.vector_store %arg13[%c0_3, %c34, %c0_4], %2 {strides = array<i32>} : memref<2x36x32xf32, #tpu.memory_space<vmem>>, vector<2x2x32xf32>,
    %c0_5 = arith.constant 0 : index
    %c0_6 = arith.constant 0 : index
    %c0_7 = arith.constant 0 : index
    %4 = vector.load %arg1[%c0_5, %c0_6, %c0_7] : memref<2x32x32xf32, #tpu.memory_space<vmem>>, vector<2x32x32xf32>
    %c0_8 = arith.constant 0 : index
    %c2 = arith.constant 2 : index
    %c0_9 = arith.constant 0 : index
    %5 = vector.load %arg13[%c0_8, %c2, %c0_9] : memref<2x36x32xf32, #tpu.memory_space<vmem>>, vector<2x32x32xf32>
    tpu.vector_store %arg13[%c0_8, %c2, %c0_9], %4 {strides = array<i32>} : memref<2x36x32xf32, #tpu.memory_space<vmem>>, vector<2x32x32xf32>,
    %cst_10 = arith.constant 0.000000e+00 : f32
    %6 = vector.broadcast %cst_10 : f32 to vector<64x256xf32>
    %c0_11 = arith.constant 0 : index
    %c0_12 = arith.constant 0 : index
    %c0_13 = arith.constant 0 : index
    %7 = vector.load %arg13[%c0_11, %c0_12, %c0_13] : memref<2x36x32xf32, #tpu.memory_space<vmem>>, vector<2x32x32xf32>
    %8 = vector.shape_cast %7 : vector<2x32x32xf32> to vector<64x32xf32>
    %c0_14 = arith.constant 0 : index
    %c0_15 = arith.constant 0 : index
    %c0_16 = arith.constant 0 : index
    %9 = vector.load %arg2[%c0_14, %c0_15, %c0_16] : memref<5x32x256xf32, #tpu.memory_space<vmem>>, vector<1x32x256xf32>
    %10 = vector.shape_cast %9 : vector<1x32x256xf32> to vector<32x256xf32>
    %cst_17 = arith.constant dense<0.000000e+00> : vector<64x256xf32>
    %11 = tpu.matmul %8, %10, %cst_17 {dimension_numbers = #tpu.dot_dimension_numbers<[1], [0], [0], [1], [0, 0, 1, 1], [], []>} : vector<64x32xf32>, vector<32x256xf32>, vector<64x256xf32> -> vector<64x256xf32>
    %12 = arith.addf %6, %11 : vector<64x256xf32>
    %c0_18 = arith.constant 0 : index
    %c1 = arith.constant 1 : index
    %c0_19 = arith.constant 0 : index
    %13 = vector.load %arg13[%c0_18, %c1, %c0_19] : memref<2x36x32xf32, #tpu.memory_space<vmem>>, vector<2x32x32xf32>
    %14 = vector.shape_cast %13 : vector<2x32x32xf32> to vector<64x32xf32>
    %c1_20 = arith.constant 1 : index
    %c0_21 = arith.constant 0 : index
    %c0_22 = arith.constant 0 : index
    %15 = vector.load %arg2[%c1_20, %c0_21, %c0_22] : memref<5x32x256xf32, #tpu.memory_space<vmem>>, vector<1x32x256xf32>
    %16 = vector.shape_cast %15 : vector<1x32x256xf32> to vector<32x256xf32>
    %cst_23 = arith.constant dense<0.000000e+00> : vector<64x256xf32>
    %17 = tpu.matmul %14, %16, %cst_23 {dimension_numbers = #tpu.dot_dimension_numbers<[1], [0], [0], [1], [0, 0, 1, 1], [], []>} : vector<64x32xf32>, vector<32x256xf32>, vector<64x256xf32> -> vector<64x256xf32>
    %18 = arith.addf %12, %17 : vector<64x256xf32>
    %c0_24 = arith.constant 0 : index
    %c2_25 = arith.constant 2 : index
    %c0_26 = arith.constant 0 : index
    %19 = vector.load %arg13[%c0_24, %c2_25, %c0_26] : memref<2x36x32xf32, #tpu.memory_space<vmem>>, vector<2x32x32xf32>
    %20 = vector.shape_cast %19 : vector<2x32x32xf32> to vector<64x32xf32>
    %c2_27 = arith.constant 2 : index
    %c0_28 = arith.constant 0 : index
    %c0_29 = arith.constant 0 : index
    %21 = vector.load %arg2[%c2_27, %c0_28, %c0_29] : memref<5x32x256xf32, #tpu.memory_space<vmem>>, vector<1x32x256xf32>
    %22 = vector.shape_cast %21 : vector<1x32x256xf32> to vector<32x256xf32>
    %cst_30 = arith.constant dense<0.000000e+00> : vector<64x256xf32>
    %23 = tpu.matmul %20, %22, %cst_30 {dimension_numbers = #tpu.dot_dimension_numbers<[1], [0], [0], [1], [0, 0, 1, 1], [], []>} : vector<64x32xf32>, vector<32x256xf32>, vector<64x256xf32> -> vector<64x256xf32>
    %24 = arith.addf %18, %23 : vector<64x256xf32>
    %c0_31 = arith.constant 0 : index
    %c3 = arith.constant 3 : index
    %c0_32 = arith.constant 0 : index
    %25 = vector.load %arg13[%c0_31, %c3, %c0_32] : memref<2x36x32xf32, #tpu.memory_space<vmem>>, vector<2x32x32xf32>
    %26 = vector.shape_cast %25 : vector<2x32x32xf32> to vector<64x32xf32>
    %c3_33 = arith.constant 3 : index
    %c0_34 = arith.constant 0 : index
    %c0_35 = arith.constant 0 : index
    %27 = vector.load %arg2[%c3_33, %c0_34, %c0_35] : memref<5x32x256xf32, #tpu.memory_space<vmem>>, vector<1x32x256xf32>
    %28 = vector.shape_cast %27 : vector<1x32x256xf32> to vector<32x256xf32>
    %cst_36 = arith.constant dense<0.000000e+00> : vector<64x256xf32>
    %29 = tpu.matmul %26, %28, %cst_36 {dimension_numbers = #tpu.dot_dimension_numbers<[1], [0], [0], [1], [0, 0, 1, 1], [], []>} : vector<64x32xf32>, vector<32x256xf32>, vector<64x256xf32> -> vector<64x256xf32>
    %30 = arith.addf %24, %29 : vector<64x256xf32>
    %c0_37 = arith.constant 0 : index
    %c4 = arith.constant 4 : index
    %c0_38 = arith.constant 0 : index
    %31 = vector.load %arg13[%c0_37, %c4, %c0_38] : memref<2x36x32xf32, #tpu.memory_space<vmem>>, vector<2x32x32xf32>
    %32 = vector.shape_cast %31 : vector<2x32x32xf32> to vector<64x32xf32>
    %c4_39 = arith.constant 4 : index
    %c0_40 = arith.constant 0 : index
    %c0_41 = arith.constant 0 : index
    %33 = vector.load %arg2[%c4_39, %c0_40, %c0_41] : memref<5x32x256xf32, #tpu.memory_space<vmem>>, vector<1x32x256xf32>
    %34 = vector.shape_cast %33 : vector<1x32x256xf32> to vector<32x256xf32>
    %cst_42 = arith.constant dense<0.000000e+00> : vector<64x256xf32>
    %35 = tpu.matmul %32, %34, %cst_42 {dimension_numbers = #tpu.dot_dimension_numbers<[1], [0], [0], [1], [0, 0, 1, 1], [], []>} : vector<64x32xf32>, vector<32x256xf32>, vector<64x256xf32> -> vector<64x256xf32>
    %36 = arith.addf %30, %35 : vector<64x256xf32>
    %c0_43 = arith.constant 0 : index
    %c0_44 = arith.constant 0 : index
    %37 = vector.load %arg3[%c0_43, %c0_44] : memref<1x256xf32, #tpu.memory_space<vmem>>, vector<1x256xf32>
    %38 = vector.broadcast %37 : vector<1x256xf32> to vector<64x256xf32>
    %39 = arith.addf %36, %38 : vector<64x256xf32>
    %cst_45 = arith.constant 0.000000e+00 : f32
    %40 = vector.broadcast %cst_45 : f32 to vector<64x256xf32>
    %41 = arith.maximumf %39, %40 : vector<64x256xf32>
    %42 = vector.extract_strided_slice %41 {offsets = [0, 0], sizes = [64, 128], strides = [1, 1]} : vector<64x256xf32> to vector<64x128xf32>
    %43 = vector.extract_strided_slice %41 {offsets = [0, 128], sizes = [64, 128], strides = [1, 1]} : vector<64x256xf32> to vector<64x128xf32>
    %44 = arith.maximumf %42, %43 : vector<64x128xf32>
    %45 = vector.shape_cast %44 : vector<64x128xf32> to vector<32x2x128xf32>
    %46 = vector.extract_strided_slice %45 {offsets = [0, 0, 0], sizes = [32, 1, 128], strides = [1, 1, 1]} : vector<32x2x128xf32> to vector<32x1x128xf32>
    %47 = vector.shape_cast %46 : vector<32x1x128xf32> to vector<32x128xf32>
    %48 = vector.extract_strided_slice %45 {offsets = [0, 1, 0], sizes = [32, 1, 128], strides = [1, 1, 1]} : vector<32x2x128xf32> to vector<32x1x128xf32>
    %49 = vector.shape_cast %48 : vector<32x1x128xf32> to vector<32x128xf32>
    %50 = arith.maximumf %47, %49 : vector<32x128xf32>
    %cst_46 = arith.constant 0.000000e+00 : f32
    %51 = vector.broadcast %cst_46 : f32 to vector<2x2x128xf32>
    %c0_47 = arith.constant 0 : index
    %c0_48 = arith.constant 0 : index
    %c0_49 = arith.constant 0 : index
    %52 = vector.load %arg14[%c0_47, %c0_48, %c0_49] : memref<2x20x128xf32, #tpu.memory_space<vmem>>, vector<2x2x128xf32>
    tpu.vector_store %arg14[%c0_47, %c0_48, %c0_49], %51 {strides = array<i32>} : memref<2x20x128xf32, #tpu.memory_space<vmem>>, vector<2x2x128xf32>,
    %cst_50 = arith.constant 0.000000e+00 : f32
    %53 = vector.broadcast %cst_50 : f32 to vector<2x2x128xf32>
    %c0_51 = arith.constant 0 : index
    %c18 = arith.constant 18 : index
    %c0_52 = arith.constant 0 : index
    %54 = vector.load %arg14[%c0_51, %c18, %c0_52] : memref<2x20x128xf32, #tpu.memory_space<vmem>>, vector<2x2x128xf32>
    tpu.vector_store %arg14[%c0_51, %c18, %c0_52], %53 {strides = array<i32>} : memref<2x20x128xf32, #tpu.memory_space<vmem>>, vector<2x2x128xf32>,
    %55 = vector.shape_cast %50 : vector<32x128xf32> to vector<2x16x128xf32>
    %c0_53 = arith.constant 0 : index
    %c2_54 = arith.constant 2 : index
    %c0_55 = arith.constant 0 : index
    %56 = vector.load %arg14[%c0_53, %c2_54, %c0_55] : memref<2x20x128xf32, #tpu.memory_space<vmem>>, vector<2x16x128xf32>
    tpu.vector_store %arg14[%c0_53, %c2_54, %c0_55], %55 {strides = array<i32>} : memref<2x20x128xf32, #tpu.memory_space<vmem>>, vector<2x16x128xf32>,
    %cst_56 = arith.constant 0.000000e+00 : f32
    %57 = vector.broadcast %cst_56 : f32 to vector<32x256xf32>
    %c0_57 = arith.constant 0 : index
    %c0_58 = arith.constant 0 : index
    %c0_59 = arith.constant 0 : index
    %58 = vector.load %arg14[%c0_57, %c0_58, %c0_59] : memref<2x20x128xf32, #tpu.memory_space<vmem>>, vector<2x16x128xf32>
    %59 = vector.shape_cast %58 : vector<2x16x128xf32> to vector<32x128xf32>
    %c0_60 = arith.constant 0 : index
    %c0_61 = arith.constant 0 : index
    %c0_62 = arith.constant 0 : index
    %60 = vector.load %arg4[%c0_60, %c0_61, %c0_62] : memref<5x128x256xf32, #tpu.memory_space<vmem>>, vector<1x128x256xf32>
    %61 = vector.shape_cast %60 : vector<1x128x256xf32> to vector<128x256xf32>
    %cst_63 = arith.constant dense<0.000000e+00> : vector<32x256xf32>
    %62 = tpu.matmul %59, %61, %cst_63 {dimension_numbers = #tpu.dot_dimension_numbers<[1], [0], [0], [1], [0, 0, 1, 1], [], []>} : vector<32x128xf32>, vector<128x256xf32>, vector<32x256xf32> -> vector<32x256xf32>
    %63 = arith.addf %57, %62 : vector<32x256xf32>
    %c0_64 = arith.constant 0 : index
    %c1_65 = arith.constant 1 : index
    %c0_66 = arith.constant 0 : index
    %64 = vector.load %arg14[%c0_64, %c1_65, %c0_66] : memref<2x20x128xf32, #tpu.memory_space<vmem>>, vector<2x16x128xf32>
    %65 = vector.shape_cast %64 : vector<2x16x128xf32> to vector<32x128xf32>
    %c1_67 = arith.constant 1 : index
    %c0_68 = arith.constant 0 : index
    %c0_69 = arith.constant 0 : index
    %66 = vector.load %arg4[%c1_67, %c0_68, %c0_69] : memref<5x128x256xf32, #tpu.memory_space<vmem>>, vector<1x128x256xf32>
    %67 = vector.shape_cast %66 : vector<1x128x256xf32> to vector<128x256xf32>
    %cst_70 = arith.constant dense<0.000000e+00> : vector<32x256xf32>
    %68 = tpu.matmul %65, %67, %cst_70 {dimension_numbers = #tpu.dot_dimension_numbers<[1], [0], [0], [1], [0, 0, 1, 1], [], []>} : vector<32x128xf32>, vector<128x256xf32>, vector<32x256xf32> -> vector<32x256xf32>
    %69 = arith.addf %63, %68 : vector<32x256xf32>
    %c0_71 = arith.constant 0 : index
    %c2_72 = arith.constant 2 : index
    %c0_73 = arith.constant 0 : index
    %70 = vector.load %arg14[%c0_71, %c2_72, %c0_73] : memref<2x20x128xf32, #tpu.memory_space<vmem>>, vector<2x16x128xf32>
    %71 = vector.shape_cast %70 : vector<2x16x128xf32> to vector<32x128xf32>
    %c2_74 = arith.constant 2 : index
    %c0_75 = arith.constant 0 : index
    %c0_76 = arith.constant 0 : index
    %72 = vector.load %arg4[%c2_74, %c0_75, %c0_76] : memref<5x128x256xf32, #tpu.memory_space<vmem>>, vector<1x128x256xf32>
    %73 = vector.shape_cast %72 : vector<1x128x256xf32> to vector<128x256xf32>
    %cst_77 = arith.constant dense<0.000000e+00> : vector<32x256xf32>
    %74 = tpu.matmul %71, %73, %cst_77 {dimension_numbers = #tpu.dot_dimension_numbers<[1], [0], [0], [1], [0, 0, 1, 1], [], []>} : vector<32x128xf32>, vector<128x256xf32>, vector<32x256xf32> -> vector<32x256xf32>
    %75 = arith.addf %69, %74 : vector<32x256xf32>
    %c0_78 = arith.constant 0 : index
    %c3_79 = arith.constant 3 : index
    %c0_80 = arith.constant 0 : index
    %76 = vector.load %arg14[%c0_78, %c3_79, %c0_80] : memref<2x20x128xf32, #tpu.memory_space<vmem>>, vector<2x16x128xf32>
    %77 = vector.shape_cast %76 : vector<2x16x128xf32> to vector<32x128xf32>
    %c3_81 = arith.constant 3 : index
    %c0_82 = arith.constant 0 : index
    %c0_83 = arith.constant 0 : index
    %78 = vector.load %arg4[%c3_81, %c0_82, %c0_83] : memref<5x128x256xf32, #tpu.memory_space<vmem>>, vector<1x128x256xf32>
    %79 = vector.shape_cast %78 : vector<1x128x256xf32> to vector<128x256xf32>
    %cst_84 = arith.constant dense<0.000000e+00> : vector<32x256xf32>
    %80 = tpu.matmul %77, %79, %cst_84 {dimension_numbers = #tpu.dot_dimension_numbers<[1], [0], [0], [1], [0, 0, 1, 1], [], []>} : vector<32x128xf32>, vector<128x256xf32>, vector<32x256xf32> -> vector<32x256xf32>
    %81 = arith.addf %75, %80 : vector<32x256xf32>
    %c0_85 = arith.constant 0 : index
    %c4_86 = arith.constant 4 : index
    %c0_87 = arith.constant 0 : index
    %82 = vector.load %arg14[%c0_85, %c4_86, %c0_87] : memref<2x20x128xf32, #tpu.memory_space<vmem>>, vector<2x16x128xf32>
    %83 = vector.shape_cast %82 : vector<2x16x128xf32> to vector<32x128xf32>
    %c4_88 = arith.constant 4 : index
    %c0_89 = arith.constant 0 : index
    %c0_90 = arith.constant 0 : index
    %84 = vector.load %arg4[%c4_88, %c0_89, %c0_90] : memref<5x128x256xf32, #tpu.memory_space<vmem>>, vector<1x128x256xf32>
    %85 = vector.shape_cast %84 : vector<1x128x256xf32> to vector<128x256xf32>
    %cst_91 = arith.constant dense<0.000000e+00> : vector<32x256xf32>
    %86 = tpu.matmul %83, %85, %cst_91 {dimension_numbers = #tpu.dot_dimension_numbers<[1], [0], [0], [1], [0, 0, 1, 1], [], []>} : vector<32x128xf32>, vector<128x256xf32>, vector<32x256xf32> -> vector<32x256xf32>
    %87 = arith.addf %81, %86 : vector<32x256xf32>
    %c0_92 = arith.constant 0 : index
    %c0_93 = arith.constant 0 : index
    %88 = vector.load %arg5[%c0_92, %c0_93] : memref<1x256xf32, #tpu.memory_space<vmem>>, vector<1x256xf32>
    %89 = vector.broadcast %88 : vector<1x256xf32> to vector<32x256xf32>
    %90 = arith.addf %87, %89 : vector<32x256xf32>
    %cst_94 = arith.constant 0.000000e+00 : f32
    %91 = vector.broadcast %cst_94 : f32 to vector<32x256xf32>
    %92 = arith.maximumf %90, %91 : vector<32x256xf32>
    %93 = vector.extract_strided_slice %92 {offsets = [0, 0], sizes = [32, 128], strides = [1, 1]} : vector<32x256xf32> to vector<32x128xf32>
    %94 = vector.extract_strided_slice %92 {offsets = [0, 128], sizes = [32, 128], strides = [1, 1]} : vector<32x256xf32> to vector<32x128xf32>
    %95 = arith.maximumf %93, %94 : vector<32x128xf32>
    %96 = vector.shape_cast %95 : vector<32x128xf32> to vector<16x2x128xf32>
    %97 = vector.extract_strided_slice %96 {offsets = [0, 0, 0], sizes = [16, 1, 128], strides = [1, 1, 1]} : vector<16x2x128xf32> to vector<16x1x128xf32>
    %98 = vector.shape_cast %97 : vector<16x1x128xf32> to vector<16x128xf32>
    %99 = vector.extract_strided_slice %96 {offsets = [0, 1, 0], sizes = [16, 1, 128], strides = [1, 1, 1]} : vector<16x2x128xf32> to vector<16x1x128xf32>
    %100 = vector.shape_cast %99 : vector<16x1x128xf32> to vector<16x128xf32>
    %101 = arith.maximumf %98, %100 : vector<16x128xf32>
    %102 = vector.shape_cast %101 : vector<16x128xf32> to vector<2x8x128xf32>
    %cst_95 = arith.constant 0.000000e+00 : f32
    %103 = vector.broadcast %cst_95 : f32 to vector<2x128xf32>
    %104 = vector.extract_strided_slice %102 {offsets = [0, 0, 0], sizes = [2, 1, 128], strides = [1, 1, 1]} : vector<2x8x128xf32> to vector<2x1x128xf32>
    %105 = vector.shape_cast %104 : vector<2x1x128xf32> to vector<2x128xf32>
    %c0_96 = arith.constant 0 : index
    %c0_97 = arith.constant 0 : index
    %c0_98 = arith.constant 0 : index
    %106 = vector.load %arg6[%c0_96, %c0_97, %c0_98] : memref<8x128x128xf32, #tpu.memory_space<vmem>>, vector<1x128x128xf32>
    %107 = vector.shape_cast %106 : vector<1x128x128xf32> to vector<128x128xf32>
    %cst_99 = arith.constant dense<0.000000e+00> : vector<2x128xf32>
    %108 = tpu.matmul %105, %107, %cst_99 {dimension_numbers = #tpu.dot_dimension_numbers<[1], [0], [0], [1], [0, 0, 1, 1], [], []>} : vector<2x128xf32>, vector<128x128xf32>, vector<2x128xf32> -> vector<2x128xf32>
    %109 = arith.addf %103, %108 : vector<2x128xf32>
    %110 = vector.extract_strided_slice %102 {offsets = [0, 1, 0], sizes = [2, 1, 128], strides = [1, 1, 1]} : vector<2x8x128xf32> to vector<2x1x128xf32>
    %111 = vector.shape_cast %110 : vector<2x1x128xf32> to vector<2x128xf32>
    %c1_100 = arith.constant 1 : index
    %c0_101 = arith.constant 0 : index
    %c0_102 = arith.constant 0 : index
    %112 = vector.load %arg6[%c1_100, %c0_101, %c0_102] : memref<8x128x128xf32, #tpu.memory_space<vmem>>, vector<1x128x128xf32>
    %113 = vector.shape_cast %112 : vector<1x128x128xf32> to vector<128x128xf32>
    %cst_103 = arith.constant dense<0.000000e+00> : vector<2x128xf32>
    %114 = tpu.matmul %111, %113, %cst_103 {dimension_numbers = #tpu.dot_dimension_numbers<[1], [0], [0], [1], [0, 0, 1, 1], [], []>} : vector<2x128xf32>, vector<128x128xf32>, vector<2x128xf32> -> vector<2x128xf32>
    %115 = arith.addf %109, %114 : vector<2x128xf32>
    %116 = vector.extract_strided_slice %102 {offsets = [0, 2, 0], sizes = [2, 1, 128], strides = [1, 1, 1]} : vector<2x8x128xf32> to vector<2x1x128xf32>
    %117 = vector.shape_cast %116 : vector<2x1x128xf32> to vector<2x128xf32>
    %c2_104 = arith.constant 2 : index
    %c0_105 = arith.constant 0 : index
    %c0_106 = arith.constant 0 : index
    %118 = vector.load %arg6[%c2_104, %c0_105, %c0_106] : memref<8x128x128xf32, #tpu.memory_space<vmem>>, vector<1x128x128xf32>
    %119 = vector.shape_cast %118 : vector<1x128x128xf32> to vector<128x128xf32>
    %cst_107 = arith.constant dense<0.000000e+00> : vector<2x128xf32>
    %120 = tpu.matmul %117, %119, %cst_107 {dimension_numbers = #tpu.dot_dimension_numbers<[1], [0], [0], [1], [0, 0, 1, 1], [], []>} : vector<2x128xf32>, vector<128x128xf32>, vector<2x128xf32> -> vector<2x128xf32>
    %121 = arith.addf %115, %120 : vector<2x128xf32>
    %122 = vector.extract_strided_slice %102 {offsets = [0, 3, 0], sizes = [2, 1, 128], strides = [1, 1, 1]} : vector<2x8x128xf32> to vector<2x1x128xf32>
    %123 = vector.shape_cast %122 : vector<2x1x128xf32> to vector<2x128xf32>
    %c3_108 = arith.constant 3 : index
    %c0_109 = arith.constant 0 : index
    %c0_110 = arith.constant 0 : index
    %124 = vector.load %arg6[%c3_108, %c0_109, %c0_110] : memref<8x128x128xf32, #tpu.memory_space<vmem>>, vector<1x128x128xf32>
    %125 = vector.shape_cast %124 : vector<1x128x128xf32> to vector<128x128xf32>
    %cst_111 = arith.constant dense<0.000000e+00> : vector<2x128xf32>
    %126 = tpu.matmul %123, %125, %cst_111 {dimension_numbers = #tpu.dot_dimension_numbers<[1], [0], [0], [1], [0, 0, 1, 1], [], []>} : vector<2x128xf32>, vector<128x128xf32>, vector<2x128xf32> -> vector<2x128xf32>
    %127 = arith.addf %121, %126 : vector<2x128xf32>
    %128 = vector.extract_strided_slice %102 {offsets = [0, 4, 0], sizes = [2, 1, 128], strides = [1, 1, 1]} : vector<2x8x128xf32> to vector<2x1x128xf32>
    %129 = vector.shape_cast %128 : vector<2x1x128xf32> to vector<2x128xf32>
    %c4_112 = arith.constant 4 : index
    %c0_113 = arith.constant 0 : index
    %c0_114 = arith.constant 0 : index
    %130 = vector.load %arg6[%c4_112, %c0_113, %c0_114] : memref<8x128x128xf32, #tpu.memory_space<vmem>>, vector<1x128x128xf32>
    %131 = vector.shape_cast %130 : vector<1x128x128xf32> to vector<128x128xf32>
    %cst_115 = arith.constant dense<0.000000e+00> : vector<2x128xf32>
    %132 = tpu.matmul %129, %131, %cst_115 {dimension_numbers = #tpu.dot_dimension_numbers<[1], [0], [0], [1], [0, 0, 1, 1], [], []>} : vector<2x128xf32>, vector<128x128xf32>, vector<2x128xf32> -> vector<2x128xf32>
    %133 = arith.addf %127, %132 : vector<2x128xf32>
    %134 = vector.extract_strided_slice %102 {offsets = [0, 5, 0], sizes = [2, 1, 128], strides = [1, 1, 1]} : vector<2x8x128xf32> to vector<2x1x128xf32>
    %135 = vector.shape_cast %134 : vector<2x1x128xf32> to vector<2x128xf32>
    %c5 = arith.constant 5 : index
    %c0_116 = arith.constant 0 : index
    %c0_117 = arith.constant 0 : index
    %136 = vector.load %arg6[%c5, %c0_116, %c0_117] : memref<8x128x128xf32, #tpu.memory_space<vmem>>, vector<1x128x128xf32>
    %137 = vector.shape_cast %136 : vector<1x128x128xf32> to vector<128x128xf32>
    %cst_118 = arith.constant dense<0.000000e+00> : vector<2x128xf32>
    %138 = tpu.matmul %135, %137, %cst_118 {dimension_numbers = #tpu.dot_dimension_numbers<[1], [0], [0], [1], [0, 0, 1, 1], [], []>} : vector<2x128xf32>, vector<128x128xf32>, vector<2x128xf32> -> vector<2x128xf32>
    %139 = arith.addf %133, %138 : vector<2x128xf32>
    %140 = vector.extract_strided_slice %102 {offsets = [0, 6, 0], sizes = [2, 1, 128], strides = [1, 1, 1]} : vector<2x8x128xf32> to vector<2x1x128xf32>
    %141 = vector.shape_cast %140 : vector<2x1x128xf32> to vector<2x128xf32>
    %c6 = arith.constant 6 : index
    %c0_119 = arith.constant 0 : index
    %c0_120 = arith.constant 0 : index
    %142 = vector.load %arg6[%c6, %c0_119, %c0_120] : memref<8x128x128xf32, #tpu.memory_space<vmem>>, vector<1x128x128xf32>
    %143 = vector.shape_cast %142 : vector<1x128x128xf32> to vector<128x128xf32>
    %cst_121 = arith.constant dense<0.000000e+00> : vector<2x128xf32>
    %144 = tpu.matmul %141, %143, %cst_121 {dimension_numbers = #tpu.dot_dimension_numbers<[1], [0], [0], [1], [0, 0, 1, 1], [], []>} : vector<2x128xf32>, vector<128x128xf32>, vector<2x128xf32> -> vector<2x128xf32>
    %145 = arith.addf %139, %144 : vector<2x128xf32>
    %146 = vector.extract_strided_slice %102 {offsets = [0, 7, 0], sizes = [2, 1, 128], strides = [1, 1, 1]} : vector<2x8x128xf32> to vector<2x1x128xf32>
    %147 = vector.shape_cast %146 : vector<2x1x128xf32> to vector<2x128xf32>
    %c7 = arith.constant 7 : index
    %c0_122 = arith.constant 0 : index
    %c0_123 = arith.constant 0 : index
    %148 = vector.load %arg6[%c7, %c0_122, %c0_123] : memref<8x128x128xf32, #tpu.memory_space<vmem>>, vector<1x128x128xf32>
    %149 = vector.shape_cast %148 : vector<1x128x128xf32> to vector<128x128xf32>
    %cst_124 = arith.constant dense<0.000000e+00> : vector<2x128xf32>
    %150 = tpu.matmul %147, %149, %cst_124 {dimension_numbers = #tpu.dot_dimension_numbers<[1], [0], [0], [1], [0, 0, 1, 1], [], []>} : vector<2x128xf32>, vector<128x128xf32>, vector<2x128xf32> -> vector<2x128xf32>
    %151 = arith.addf %145, %150 : vector<2x128xf32>
    %c0_125 = arith.constant 0 : index
    %c0_126 = arith.constant 0 : index
    %152 = vector.load %arg7[%c0_125, %c0_126] : memref<1x128xf32, #tpu.memory_space<vmem>>, vector<1x128xf32>
    %153 = vector.broadcast %152 : vector<1x128xf32> to vector<2x128xf32>
    %154 = arith.addf %151, %153 : vector<2x128xf32>
    %cst_127 = arith.constant 0.000000e+00 : f32
    %155 = vector.broadcast %cst_127 : f32 to vector<2x128xf32>
    %156 = arith.maximumf %154, %155 : vector<2x128xf32>
    %c0_128 = arith.constant 0 : index
    %c0_129 = arith.constant 0 : index
    %157 = vector.load %arg8[%c0_128, %c0_129] : memref<128x128xf32, #tpu.memory_space<vmem>>, vector<128x128xf32>
    %cst_130 = arith.constant dense<0.000000e+00> : vector<2x128xf32>
    %158 = tpu.matmul %156, %157, %cst_130 {dimension_numbers = #tpu.dot_dimension_numbers<[1], [0], [0], [1], [0, 0, 1, 1], [], []>} : vector<2x128xf32>, vector<128x128xf32>, vector<2x128xf32> -> vector<2x128xf32>
    %c0_131 = arith.constant 0 : index
    %c0_132 = arith.constant 0 : index
    %159 = vector.load %arg9[%c0_131, %c0_132] : memref<1x128xf32, #tpu.memory_space<vmem>>, vector<1x128xf32>
    %160 = vector.broadcast %159 : vector<1x128xf32> to vector<2x128xf32>
    %161 = arith.addf %158, %160 : vector<2x128xf32>
    %cst_133 = arith.constant 0.000000e+00 : f32
    %162 = vector.broadcast %cst_133 : f32 to vector<2x128xf32>
    %163 = arith.maximumf %161, %162 : vector<2x128xf32>
    %c0_134 = arith.constant 0 : index
    %c0_135 = arith.constant 0 : index
    %164 = vector.load %arg10[%c0_134, %c0_135] : memref<128x128xf32, #tpu.memory_space<vmem>>, vector<128x128xf32>
    %cst_136 = arith.constant dense<0.000000e+00> : vector<2x128xf32>
    %165 = tpu.matmul %163, %164, %cst_136 {dimension_numbers = #tpu.dot_dimension_numbers<[1], [0], [0], [1], [0, 0, 1, 1], [], []>} : vector<2x128xf32>, vector<128x128xf32>, vector<2x128xf32> -> vector<2x128xf32>
    %c0_137 = arith.constant 0 : index
    %c0_138 = arith.constant 0 : index
    %166 = vector.load %arg11[%c0_137, %c0_138] : memref<1x128xf32, #tpu.memory_space<vmem>>, vector<1x128xf32>
    %167 = vector.broadcast %166 : vector<1x128xf32> to vector<2x128xf32>
    %168 = arith.addf %165, %167 : vector<2x128xf32>
    %c0_139 = arith.constant 0 : index
    %c0_140 = arith.constant 0 : index
    %169 = vector.load %arg12[%c0_139, %c0_140] : memref<2x128xf32, #tpu.memory_space<vmem>>, vector<2x128xf32>
    tpu.vector_store %arg12[%c0_139, %c0_140], %168 {strides = array<i32>} : memref<2x128xf32, #tpu.memory_space<vmem>>, vector<2x128xf32>,
    return
  }
  func.func @transform_0(%arg0: i32) -> (i32, i32, i32) {
    %c0_i32 = arith.constant 0 : i32
    %c0_i32_0 = arith.constant 0 : i32
    %c0_i32_1 = arith.constant 0 : i32
    return %arg0, %c0_i32, %c0_i32_0 : i32, i32, i32
  }
  func.func @transform_1(%arg0: i32) -> (i32, i32, i32) {
    %c0_i32 = arith.constant 0 : i32
    %c0_i32_0 = arith.constant 0 : i32
    %c0_i32_1 = arith.constant 0 : i32
    %c0_i32_2 = arith.constant 0 : i32
    return %c0_i32, %c0_i32_0, %c0_i32_1 : i32, i32, i32
  }
  func.func @transform_2(%arg0: i32) -> (i32, i32) {
    %c0_i32 = arith.constant 0 : i32
    %c0_i32_0 = arith.constant 0 : i32
    %c0_i32_1 = arith.constant 0 : i32
    return %c0_i32, %c0_i32_0 : i32, i32
  }
  func.func @transform_3(%arg0: i32) -> (i32, i32, i32) {
    %c0_i32 = arith.constant 0 : i32
    %c0_i32_0 = arith.constant 0 : i32
    %c0_i32_1 = arith.constant 0 : i32
    %c0_i32_2 = arith.constant 0 : i32
    return %c0_i32, %c0_i32_0, %c0_i32_1 : i32, i32, i32
  }
  func.func @transform_4(%arg0: i32) -> (i32, i32) {
    %c0_i32 = arith.constant 0 : i32
    %c0_i32_0 = arith.constant 0 : i32
    %c0_i32_1 = arith.constant 0 : i32
    return %c0_i32, %c0_i32_0 : i32, i32
  }
  func.func @transform_5(%arg0: i32) -> (i32, i32, i32) {
    %c0_i32 = arith.constant 0 : i32
    %c0_i32_0 = arith.constant 0 : i32
    %c0_i32_1 = arith.constant 0 : i32
    %c0_i32_2 = arith.constant 0 : i32
    return %c0_i32, %c0_i32_0, %c0_i32_1 : i32, i32, i32
  }
  func.func @transform_6(%arg0: i32) -> (i32, i32) {
    %c0_i32 = arith.constant 0 : i32
    %c0_i32_0 = arith.constant 0 : i32
    %c0_i32_1 = arith.constant 0 : i32
    return %c0_i32, %c0_i32_0 : i32, i32
  }
  func.func @transform_7(%arg0: i32) -> (i32, i32) {
    %c0_i32 = arith.constant 0 : i32
    %c0_i32_0 = arith.constant 0 : i32
    %c0_i32_1 = arith.constant 0 : i32
    return %c0_i32, %c0_i32_0 : i32, i32
  }
  func.func @transform_8(%arg0: i32) -> (i32, i32) {
    %c0_i32 = arith.constant 0 : i32
    %c0_i32_0 = arith.constant 0 : i32
    %c0_i32_1 = arith.constant 0 : i32
    return %c0_i32, %c0_i32_0 : i32, i32
  }
  func.func @transform_9(%arg0: i32) -> (i32, i32) {
    %c0_i32 = arith.constant 0 : i32
    %c0_i32_0 = arith.constant 0 : i32
    %c0_i32_1 = arith.constant 0 : i32
    return %c0_i32, %c0_i32_0 : i32, i32
  }
  func.func @transform_10(%arg0: i32) -> (i32, i32) {
    %c0_i32 = arith.constant 0 : i32
    %c0_i32_0 = arith.constant 0 : i32
    %c0_i32_1 = arith.constant 0 : i32
    return %c0_i32, %c0_i32_0 : i32, i32
  }
  func.func @transform_11(%arg0: i32) -> (i32, i32) {
    %c0_i32 = arith.constant 0 : i32
    %c0_i32_0 = arith.constant 0 : i32
    return %arg0, %c0_i32 : i32, i32
  }
}

</mosaic_0001>

<llo_original>
// kernel: net_forward.1
$region0: #{net_forward.1}
  #allocation0 [shape = 'u32[]', space=smem, size = 0x4, offset = 0x4, fixed_abs, tag = 'smem constant byte address 0x4 - core index']
  #allocation1 [shape = 'u32[72,128]{1,0:T(1,128)}', space=vmem, size = 0x9000, scoped, tag = 'internal scratch']
  #allocation2 [shape = 'f32[2,36,32]{2,1,0:T(8,128)}', space=vmem, size = 0xa000, scoped, tag = 'scratch operand']
  #allocation3 [shape = 'f32[2,20,128]{2,1,0:T(8,128)}', space=vmem, size = 0x6000, scoped, tag = 'scratch operand']
  %s0 = inlined_call_operand.hbm [shape: f32[2,32,32], index: 0, kind: input, shape index: {}]
  %s1 = inlined_call_operand.hbm [shape: f32[5,32,256], index: 1, kind: input, shape index: {}]
  %s2 = inlined_call_operand.hbm [shape: f32[1,256], index: 2, kind: input, shape index: {}]
  %s3 = inlined_call_operand.hbm [shape: f32[5,128,256], index: 3, kind: input, shape index: {}]
  %s4 = inlined_call_operand.vmem [shape: f32[1,256], index: 4, kind: input, shape index: {}]
  %s5 = inlined_call_operand.hbm [shape: f32[8,128,128], index: 5, kind: input, shape index: {}]
  %s6 = inlined_call_operand.vmem [shape: f32[1,128], index: 6, kind: input, shape index: {}]
  %s7 = inlined_call_operand.hbm [shape: f32[128,128], index: 7, kind: input, shape index: {}]
  %s8 = inlined_call_operand.vmem [shape: f32[1,128], index: 8, kind: input, shape index: {}]
  %s9 = inlined_call_operand.hbm [shape: f32[128,128], index: 9, kind: input, shape index: {}]
  %s10 = inlined_call_operand.vmem [shape: f32[1,128], index: 10, kind: input, shape index: {}]
  %s11 = inlined_call_operand.hbm [shape: f32[2,128], index: 11, kind: output, shape index: {}]
  %s12 = sld [smem:[#allocation0]]
  $region82: #{net_forward.1} parent=0
    _
  %s14 = ssub.s32 1, %s12
  %s15 = scalar_select 0, %s14, %s12
  $region1: #{net_forward.1} parent=0
    #allocation4 [shape = 'u8[32768]{0}', space=vmem, size = 0x8000, scoped, tag = 'input window, operand 0, single buffered']
    #allocation5 [shape = 's32[1]{0}', space=sflag, size = 0x4, scoped, tag = 'scoped memory for net_forward.1']
    #allocation6 [shape = 's32[1]{0}', space=sflag, size = 0x4, scoped, tag = 'scoped memory for net_forward.1']
    #allocation7 [shape = 'u8[163840]{0}', space=vmem, size = 0x28000, scoped, tag = 'input window, operand 1, single buffered']
    #allocation8 [shape = 's32[1]{0}', space=sflag, size = 0x4, scoped, tag = 'scoped memory for net_forward.1']
    #allocation9 [shape = 'u8[1024]{0}', space=vmem, size = 0x400, scoped, tag = 'input window, operand 2, single buffered']
    #allocation10 [shape = 'u8[655360]{0}', space=vmem, size = 0xa0000, scoped, tag = 'input window, operand 3, single buffered']
    #allocation11 [shape = 's32[1]{0}', space=sflag, size = 0x4, scoped, tag = 'scoped memory for net_forward.1']
    #allocation12 [shape = 'u8[524288]{0}', space=vmem, size = 0x80000, scoped, tag = 'input window, operand 5, single buffered']
    #allocation13 [shape = 'u8[65536]{0}', space=vmem, size = 0x10000, scoped, tag = 'input window, operand 7, single buffered']
    #allocation14 [shape = 's32[1]{0}', space=sflag, size = 0x4, scoped, tag = 'scoped memory for net_forward.1']
    #allocation15 [shape = 'u8[65536]{0}', space=vmem, size = 0x10000, scoped, tag = 'input window, operand 9, single buffered']
    #allocation16 [shape = 'u8[1024]{0}', space=vmem, size = 0x400, scoped, tag = 'output window, operand 0, single buffered']
    %16 = vsyncpa [#allocation5], 0
    %17 = vsyncpa [#allocation8], 0
    %18 = vsyncpa [#allocation11], 0
    %19 = vsyncpa [#allocation14], 0
    %20 = vsyncpa [#allocation6], 0
    // Predicated region
    $region2: #{net_forward.1} parent=1 // pred_check
      _
    $region3: #{net_forward.1} parent=1 // pred_check_branch
      %22 = sbr.rel (0) target = $region5
    $region4: #{net_forward.1} parent=1 // pred_region
      %24 = vsyncadd [#allocation5], 0
      %s25 = sshll.u32 %s0, 4
      %s26 = int_to_ptr.hbm [resolvable:$true] %s25
      %s27 = sshll.u32 [#allocation4], 4
      %s28 = int_to_ptr.vmem [resolvable:$true] %s27
      %33 = dma.hbm_to_vmem [thread:$0]  %s26, 1024, %s28, [#allocation5], 128, 128, 8
    $region5: #{net_forward.1} parent=1 // pred_fallthru
      _
    // Predicated region
    $region6: #{net_forward.1} parent=1 // pred_check
      _
    $region7: #{net_forward.1} parent=1 // pred_check_branch
      %35 = sbr.rel (0) target = $region9
    $region8: #{net_forward.1} parent=1 // pred_region
      %37 = vsyncadd [#allocation8], 0
      %s38 = sshll.u32 %s1, 4
      %s39 = int_to_ptr.hbm [resolvable:$true] %s38
      %s40 = sshll.u32 [#allocation7], 4
      %s41 = int_to_ptr.vmem [resolvable:$true] %s40
      %46 = dma.hbm_to_vmem [thread:$0]  %s39, 5120, %s41, [#allocation8], 256, 256, 16
    $region9: #{net_forward.1} parent=1 // pred_fallthru
      _
    // Predicated region
    $region10: #{net_forward.1} parent=1 // pred_check
      _
    $region11: #{net_forward.1} parent=1 // pred_check_branch
      %48 = sbr.rel (0) target = $region13
    $region12: #{net_forward.1} parent=1 // pred_region
      %50 = vsyncadd [#allocation8], 0
      %s52 = sshll.u32 %s2, 4
      %s53 = int_to_ptr.hbm [resolvable:$true] %s52
      %s54 = sshll.u32 [#allocation9], 4
      %s55 = int_to_ptr.vmem [resolvable:$true] %s54
      %57 = dma.hbm_to_vmem [thread:$0]  %s53, 32, %s55, [#allocation8]
    $region13: #{net_forward.1} parent=1 // pred_fallthru
      _
    // Predicated region
    $region14: #{net_forward.1} parent=1 // pred_check
      _
    $region15: #{net_forward.1} parent=1 // pred_check_branch
      %59 = sbr.rel (0) target = $region17
    $region16: #{net_forward.1} parent=1 // pred_region
      %61 = vsyncadd [#allocation11], 0
      %s62 = sshll.u32 %s3, 4
      %s63 = int_to_ptr.hbm [resolvable:$true] %s62
      %s64 = sshll.u32 [#allocation10], 4
      %s65 = int_to_ptr.vmem [resolvable:$true] %s64
      %70 = dma.hbm_to_vmem [thread:$0]  %s63, 20480, %s65, [#allocation11], 256, 256, 16
    $region17: #{net_forward.1} parent=1 // pred_fallthru
      _
    // Predicated region
    $region18: #{net_forward.1} parent=1 // pred_check
      _
    $region19: #{net_forward.1} parent=1 // pred_check_branch
      %72 = sbr.rel (0) target = $region21
    $region20: #{net_forward.1} parent=1 // pred_region
      _
    $region21: #{net_forward.1} parent=1 // pred_fallthru
      _
    // Predicated region
    $region22: #{net_forward.1} parent=1 // pred_check
      _
    $region23: #{net_forward.1} parent=1 // pred_check_branch
      %74 = sbr.rel (0) target = $region25
    $region24: #{net_forward.1} parent=1 // pred_region
      %76 = vsyncadd [#allocation11], 0
      %s77 = sshll.u32 %s5, 4
      %s78 = int_to_ptr.hbm [resolvable:$true] %s77
      %s79 = sshll.u32 [#allocation12], 4
      %s80 = int_to_ptr.vmem [resolvable:$true] %s79
      %85 = dma.hbm_to_vmem [thread:$0]  %s78, 16384, %s80, [#allocation11], 128, 128, 8
    $region25: #{net_forward.1} parent=1 // pred_fallthru
      _
    // Predicated region
    $region26: #{net_forward.1} parent=1 // pred_check
      _
    $region27: #{net_forward.1} parent=1 // pred_check_branch
      %87 = sbr.rel (0) target = $region29
    $region28: #{net_forward.1} parent=1 // pred_region
      _
    $region29: #{net_forward.1} parent=1 // pred_fallthru
      _
    // Predicated region
    $region30: #{net_forward.1} parent=1 // pred_check
      _
    $region31: #{net_forward.1} parent=1 // pred_check_branch
      %89 = sbr.rel (0) target = $region33
    $region32: #{net_forward.1} parent=1 // pred_region
      %91 = vsyncadd [#allocation14], 0
      %s92 = sshll.u32 %s7, 4
      %s93 = int_to_ptr.hbm [resolvable:$true] %s92
      %s94 = sshll.u32 [#allocation13], 4
      %s95 = int_to_ptr.vmem [resolvable:$true] %s94
      %100 = dma.hbm_to_vmem [thread:$0]  %s93, 2048, %s95, [#allocation14], 128, 128, 8
    $region33: #{net_forward.1} parent=1 // pred_fallthru
      _
    // Predicated region
    $region34: #{net_forward.1} parent=1 // pred_check
      _
    $region35: #{net_forward.1} parent=1 // pred_check_branch
      %102 = sbr.rel (0) target = $region37
    $region36: #{net_forward.1} parent=1 // pred_region
      _
    $region37: #{net_forward.1} parent=1 // pred_fallthru
      _
    // Predicated region
    $region38: #{net_forward.1} parent=1 // pred_check
      _
    $region39: #{net_forward.1} parent=1 // pred_check_branch
      %104 = sbr.rel (0) target = $region41
    $region40: #{net_forward.1} parent=1 // pred_region
      %106 = vsyncadd [#allocation14], 0
      %s107 = sshll.u32 %s9, 4
      %s108 = int_to_ptr.hbm [resolvable:$true] %s107
      %s109 = sshll.u32 [#allocation15], 4
      %s110 = int_to_ptr.vmem [resolvable:$true] %s109
      %115 = dma.hbm_to_vmem [thread:$0]  %s108, 2048, %s110, [#allocation14], 128, 128, 8
    $region41: #{net_forward.1} parent=1 // pred_fallthru
      _
    // Predicated region
    $region42: #{net_forward.1} parent=1 // pred_check
      _
    $region43: #{net_forward.1} parent=1 // pred_check_branch
      %117 = sbr.rel (0) target = $region45
    $region44: #{net_forward.1} parent=1 // pred_region
      _
    $region45: #{net_forward.1} parent=1 // pred_fallthru
      _
    // Predicated region
    $region46: #{net_forward.1} parent=1 // pred_check
      _
    $region47: #{net_forward.1} parent=1 // pred_check_branch
      %119 = sbr.rel (0) target = $region49
    $region48: #{net_forward.1} parent=1 // pred_region
      %121 = dma.done [#allocation5], 1024
    $region49: #{net_forward.1} parent=1 // pred_fallthru
      _
    // Predicated region
    $region50: #{net_forward.1} parent=1 // pred_check
      _
    $region51: #{net_forward.1} parent=1 // pred_check_branch
      %123 = sbr.rel (0) target = $region53
    $region52: #{net_forward.1} parent=1 // pred_region
      %125 = dma.done [#allocation8], 5120
    $region53: #{net_forward.1} parent=1 // pred_fallthru
      _
    // Predicated region
    $region54: #{net_forward.1} parent=1 // pred_check
      _
    $region55: #{net_forward.1} parent=1 // pred_check_branch
      %127 = sbr.rel (0) target = $region57
    $region56: #{net_forward.1} parent=1 // pred_region
      %129 = dma.done [#allocation8], 32
    $region57: #{net_forward.1} parent=1 // pred_fallthru
      _
    // Predicated region
    $region58: #{net_forward.1} parent=1 // pred_check
      _
    $region59: #{net_forward.1} parent=1 // pred_check_branch
      %131 = sbr.rel (0) target = $region61
    $region60: #{net_forward.1} parent=1 // pred_region
      %133 = dma.done [#allocation11], 20480
    $region61: #{net_forward.1} parent=1 // pred_fallthru
      _
    // Predicated region
    $region62: #{net_forward.1} parent=1 // pred_check
      _
    $region63: #{net_forward.1} parent=1 // pred_check_branch
      %135 = sbr.rel (0) target = $region65
    $region64: #{net_forward.1} parent=1 // pred_region
      %137 = dma.done [#allocation11], 16384
    $region65: #{net_forward.1} parent=1 // pred_fallthru
      _
    // Predicated region
    $region66: #{net_forward.1} parent=1 // pred_check
      _
    $region67: #{net_forward.1} parent=1 // pred_check_branch
      %139 = sbr.rel (0) target = $region69
    $region68: #{net_forward.1} parent=1 // pred_region
      %141 = dma.done [#allocation14], 2048
    $region69: #{net_forward.1} parent=1 // pred_fallthru
      _
    // Predicated region
    $region70: #{net_forward.1} parent=1 // pred_check
      _
    $region71: #{net_forward.1} parent=1 // pred_check_branch
      %143 = sbr.rel (0) target = $region73
    $region72: #{net_forward.1} parent=1 // pred_region
      %145 = dma.done [#allocation14], 2048
    $region73: #{net_forward.1} parent=1 // pred_fallthru
      _
    %vm146 = vcmask 254976
    %147 = vst.msk [vmem:[#allocation2] sm:$0x3] %vm146, 0.0
    %148 = vst.msk [vmem:[#allocation2 + $0x28] sm:$0x3] %vm146, 0.0
    %149 = vst.msk [vmem:[#allocation2 + $0x22] sm:$0x3] %vm146, 0.0
    %150 = vst.msk [vmem:[#allocation2 + $0x4a] sm:$0x3] %vm146, 0.0
    %v151 = vld [vmem:[#allocation4] sm:$0xff]
    %v152 = vld [vmem:[#allocation4 + $0x8] sm:$0xff]
    %v153 = vld [vmem:[#allocation4 + $0x10] sm:$0xff]
    %v154 = vld [vmem:[#allocation4 + $0x18] sm:$0xff]
    %v155 = vld [vmem:[#allocation4 + $0x20] sm:$0xff]
    %v156 = vld [vmem:[#allocation4 + $0x28] sm:$0xff]
    %v157 = vld [vmem:[#allocation4 + $0x30] sm:$0xff]
    %v158 = vld [vmem:[#allocation4 + $0x38] sm:$0xff]
    %vm159 = vcmask 261120
    %160 = vst.msk [vmem:[#allocation2 + $0x2] sm:$0xff] %vm159, %v151
    %161 = vst.msk [vmem:[#allocation2 + $0xa] sm:$0xff] %vm159, %v152
    %162 = vst.msk [vmem:[#allocation2 + $0x12] sm:$0xff] %vm159, %v153
    %163 = vst.msk [vmem:[#allocation2 + $0x1a] sm:$0xff] %vm159, %v154
    %164 = vst.msk [vmem:[#allocation2 + $0x2a] sm:$0xff] %vm159, %v155
    %165 = vst.msk [vmem:[#allocation2 + $0x32] sm:$0xff] %vm159, %v156
    %166 = vst.msk [vmem:[#allocation2 + $0x3a] sm:$0xff] %vm159, %v157
    %167 = vst.msk [vmem:[#allocation2 + $0x42] sm:$0xff] %vm159, %v158
    %v168 = vld [vmem:[#allocation2] sm:$0xff]
    %v169 = vld [vmem:[#allocation2 + $0x8] sm:$0xff]
    %v170 = vld [vmem:[#allocation2 + $0x10] sm:$0xff]
    %v171 = vld [vmem:[#allocation2 + $0x18] sm:$0xff]
    %v172 = vld [vmem:[#allocation2 + $0x28] sm:$0xff]
    %v173 = vld [vmem:[#allocation2 + $0x30] sm:$0xff]
    %v174 = vld [vmem:[#allocation2 + $0x38] sm:$0xff]
    %v175 = vld [vmem:[#allocation2 + $0x40] sm:$0xff]
    %v176 = vld [vmem:[#allocation7] sm:$0xff]
    %v177 = vld [vmem:[#allocation7 + $0x8] sm:$0xff]
    %v178 = vld [vmem:[#allocation7 + $0x10] sm:$0xff]
    %v179 = vld [vmem:[#allocation7 + $0x18] sm:$0xff]
    %v180 = vld [vmem:[#allocation7 + $0x20] sm:$0xff]
    %v181 = vld [vmem:[#allocation7 + $0x28] sm:$0xff]
    %v182 = vld [vmem:[#allocation7 + $0x30] sm:$0xff]
    %v183 = vld [vmem:[#allocation7 + $0x38] sm:$0xff]
    %v184 = vld [vmem:[#allocation2 + $0x1] sm:$0xff]
    %v185 = vld [vmem:[#allocation2 + $0x9] sm:$0xff]
    %v186 = vld [vmem:[#allocation2 + $0x11] sm:$0xff]
    %v187 = vld [vmem:[#allocation2 + $0x19] sm:$0xff]
    %v188 = vld [vmem:[#allocation2 + $0x29] sm:$0xff]
    %v189 = vld [vmem:[#allocation2 + $0x31] sm:$0xff]
    %v190 = vld [vmem:[#allocation2 + $0x39] sm:$0xff]
    %v191 = vld [vmem:[#allocation2 + $0x41] sm:$0xff]
    %s192 = scalar_lea.vmem [#allocation7], 64
    %v193 = vld [vmem:[%s192] sm:$0xff]
    %v194 = vld [vmem:[%s192 + $0x8] sm:$0xff]
    %v195 = vld [vmem:[%s192 + $0x10] sm:$0xff]
    %v196 = vld [vmem:[%s192 + $0x18] sm:$0xff]
    %v197 = vld [vmem:[%s192 + $0x20] sm:$0xff]
    %v198 = vld [vmem:[%s192 + $0x28] sm:$0xff]
    %v199 = vld [vmem:[%s192 + $0x30] sm:$0xff]
    %v200 = vld [vmem:[%s192 + $0x38] sm:$0xff]
    %v202 = vsel %vm159, %v184, 0
    %v205 = vsel %vm159, %v185, 0
    %v208 = vsel %vm159, %v186, 0
    %v211 = vsel %vm159, %v187, 0
    %v214 = vsel %vm159, %v188, 0
    %v217 = vsel %vm159, %v189, 0
    %v220 = vsel %vm159, %v190, 0
    %v223 = vsel %vm159, %v191, 0
    %225 = vmatpush.msra.mxu0 0.0
    %226 = vmatpush.msra.mxu0 0.0
    %227 = vmatpush.msra.mxu0 0.0
    %228 = vmatpush.msra.mxu0 0.0
    %229 = vmatpush.msra.mxu0 0.0
    %230 = vmatpush.msra.mxu0 0.0
    %231 = vmatpush.msra.mxu0 0.0
    %232 = vmatpush.msra.mxu0 0.0
    %233 = vmatpush.msra.mxu0 0.0
    %234 = vmatpush.msra.mxu0 0.0
    %235 = vmatpush.msra.mxu0 0.0
    %236 = vmatpush.msra.mxu0 0.0
    %237 = vmatpush.msra.mxu0 %v199
    %238 = vmatpush.msra.mxu0 %v197
    %239 = vmatpush.msra.mxu0 %v195
    %240 = vmatpush.msra.mxu0 %v193
    %241 = vmatmul.f32.gmra.mxu0 %v202
    %v242 = vpop.f32.mrf.mxu0
    %v243 = vadd.f32 0.0, %v242
    %244 = vmatmul.f32.gmra.mxu0 %v205
    %v245 = vpop.f32.mrf.mxu0
    %v246 = vadd.f32 0.0, %v245
    %247 = vmatmul.f32.gmra.mxu0 %v208
    %v248 = vpop.f32.mrf.mxu0
    %v249 = vadd.f32 0.0, %v248
    %250 = vmatmul.f32.gmra.mxu0 %v211
    %v251 = vpop.f32.mrf.mxu0
    %v252 = vadd.f32 0.0, %v251
    %253 = vmatmul.f32.gmra.mxu0 %v214
    %v254 = vpop.f32.mrf.mxu0
    %v255 = vadd.f32 0.0, %v254
    %256 = vmatmul.f32.gmra.mxu0 %v217
    %v257 = vpop.f32.mrf.mxu0
    %v258 = vadd.f32 0.0, %v257
    %259 = vmatmul.f32.gmra.mxu0 %v220
    %v260 = vpop.f32.mrf.mxu0
    %v261 = vadd.f32 0.0, %v260
    %262 = vmatmul.f32.gmra.mxu0 %v223
    %v263 = vpop.f32.mrf.mxu0
    %v264 = vadd.f32 0.0, %v263
    %265 = vdwg.mxu0
    %266 = vmatpush.msra.mxu0 0.0
    %267 = vmatpush.msra.mxu0 0.0
    %268 = vmatpush.msra.mxu0 0.0
    %269 = vmatpush.msra.mxu0 0.0
    %270 = vmatpush.msra.mxu0 0.0
    %271 = vmatpush.msra.mxu0 0.0
    %272 = vmatpush.msra.mxu0 0.0
    %273 = vmatpush.msra.mxu0 0.0
    %274 = vmatpush.msra.mxu0 0.0
    %275 = vmatpush.msra.mxu0 0.0
    %276 = vmatpush.msra.mxu0 0.0
    %277 = vmatpush.msra.mxu0 0.0
    %278 = vmatpush.msra.mxu0 %v200
    %279 = vmatpush.msra.mxu0 %v198
    %280 = vmatpush.msra.mxu0 %v196
    %281 = vmatpush.msra.mxu0 %v194
    %282 = vmatmul.f32.gmra.mxu0 %v202
    %v283 = vpop.f32.mrf.mxu0
    %v284 = vadd.f32 0.0, %v283
    %285 = vmatmul.f32.gmra.mxu0 %v205
    %v286 = vpop.f32.mrf.mxu0
    %v287 = vadd.f32 0.0, %v286
    %288 = vmatmul.f32.gmra.mxu0 %v208
    %v289 = vpop.f32.mrf.mxu0
    %v290 = vadd.f32 0.0, %v289
    %291 = vmatmul.f32.gmra.mxu0 %v211
    %v292 = vpop.f32.mrf.mxu0
    %v293 = vadd.f32 0.0, %v292
    %294 = vmatmul.f32.gmra.mxu0 %v214
    %v295 = vpop.f32.mrf.mxu0
    %v296 = vadd.f32 0.0, %v295
    %297 = vmatmul.f32.gmra.mxu0 %v217
    %v298 = vpop.f32.mrf.mxu0
    %v299 = vadd.f32 0.0, %v298
    %300 = vmatmul.f32.gmra.mxu0 %v220
    %v301 = vpop.f32.mrf.mxu0
    %v302 = vadd.f32 0.0, %v301
    %303 = vmatmul.f32.gmra.mxu0 %v223
    %v304 = vpop.f32.mrf.mxu0
    %v305 = vadd.f32 0.0, %v304
    %306 = vdwg.mxu0
    %v308 = vsel %vm159, %v168, 0
    %v311 = vsel %vm159, %v169, 0
    %v314 = vsel %vm159, %v170, 0
    %v317 = vsel %vm159, %v171, 0
    %v320 = vsel %vm159, %v172, 0
    %v323 = vsel %vm159, %v173, 0
    %v326 = vsel %vm159, %v174, 0
    %v329 = vsel %vm159, %v175, 0
    %331 = vmatpush.msra.mxu0 0.0
    %332 = vmatpush.msra.mxu0 0.0
    %333 = vmatpush.msra.mxu0 0.0
    %334 = vmatpush.msra.mxu0 0.0
    %335 = vmatpush.msra.mxu0 0.0
    %336 = vmatpush.msra.mxu0 0.0
    %337 = vmatpush.msra.mxu0 0.0
    %338 = vmatpush.msra.mxu0 0.0
    %339 = vmatpush.msra.mxu0 0.0
    %340 = vmatpush.msra.mxu0 0.0
    %341 = vmatpush.msra.mxu0 0.0
    %342 = vmatpush.msra.mxu0 0.0
    %343 = vmatpush.msra.mxu0 %v182
    %344 = vmatpush.msra.mxu0 %v180
    %345 = vmatpush.msra.mxu0 %v178
    %346 = vmatpush.msra.mxu0 %v176
    %347 = vmatmul.f32.gmra.mxu0 %v308
    %v348 = vpop.f32.mrf.mxu0
    %v349 = vadd.f32 %v243, %v348
    %350 = vmatmul.f32.gmra.mxu0 %v311
    %v351 = vpop.f32.mrf.mxu0
    %v352 = vadd.f32 %v246, %v351
    %353 = vmatmul.f32.gmra.mxu0 %v314
    %v354 = vpop.f32.mrf.mxu0
    %v355 = vadd.f32 %v249, %v354
    %356 = vmatmul.f32.gmra.mxu0 %v317
    %v357 = vpop.f32.mrf.mxu0
    %v358 = vadd.f32 %v252, %v357
    %359 = vmatmul.f32.gmra.mxu0 %v320
    %v360 = vpop.f32.mrf.mxu0
    %v361 = vadd.f32 %v255, %v360
    %362 = vmatmul.f32.gmra.mxu0 %v323
    %v363 = vpop.f32.mrf.mxu0
    %v364 = vadd.f32 %v258, %v363
    %365 = vmatmul.f32.gmra.mxu0 %v326
    %v366 = vpop.f32.mrf.mxu0
    %v367 = vadd.f32 %v261, %v366
    %368 = vmatmul.f32.gmra.mxu0 %v329
    %v369 = vpop.f32.mrf.mxu0
    %v370 = vadd.f32 %v264, %v369
    %371 = vdwg.mxu0
    %372 = vmatpush.msra.mxu0 0.0
    %373 = vmatpush.msra.mxu0 0.0
    %374 = vmatpush.msra.mxu0 0.0
    %375 = vmatpush.msra.mxu0 0.0
    %376 = vmatpush.msra.mxu0 0.0
    %377 = vmatpush.msra.mxu0 0.0
    %378 = vmatpush.msra.mxu0 0.0
    %379 = vmatpush.msra.mxu0 0.0
    %380 = vmatpush.msra.mxu0 0.0
    %381 = vmatpush.msra.mxu0 0.0
    %382 = vmatpush.msra.mxu0 0.0
    %383 = vmatpush.msra.mxu0 0.0
    %384 = vmatpush.msra.mxu0 %v183
    %385 = vmatpush.msra.mxu0 %v181
    %386 = vmatpush.msra.mxu0 %v179
    %387 = vmatpush.msra.mxu0 %v177
    %388 = vmatmul.f32.gmra.mxu0 %v308
    %v389 = vpop.f32.mrf.mxu0
    %v390 = vadd.f32 %v284, %v389
    %391 = vmatmul.f32.gmra.mxu0 %v311
    %v392 = vpop.f32.mrf.mxu0
    %v393 = vadd.f32 %v287, %v392
    %394 = vmatmul.f32.gmra.mxu0 %v314
    %v395 = vpop.f32.mrf.mxu0
    %v396 = vadd.f32 %v290, %v395
    %397 = vmatmul.f32.gmra.mxu0 %v317
    %v398 = vpop.f32.mrf.mxu0
    %v399 = vadd.f32 %v293, %v398
    %400 = vmatmul.f32.gmra.mxu0 %v320
    %v401 = vpop.f32.mrf.mxu0
    %v402 = vadd.f32 %v296, %v401
    %403 = vmatmul.f32.gmra.mxu0 %v323
    %v404 = vpop.f32.mrf.mxu0
    %v405 = vadd.f32 %v299, %v404
    %406 = vmatmul.f32.gmra.mxu0 %v326
    %v407 = vpop.f32.mrf.mxu0
    %v408 = vadd.f32 %v302, %v407
    %409 = vmatmul.f32.gmra.mxu0 %v329
    %v410 = vpop.f32.mrf.mxu0
    %v411 = vadd.f32 %v305, %v410
    %412 = vdwg.mxu0
    %v413 = vld [vmem:[#allocation2 + $0x2] sm:$0xff]
    %v414 = vld [vmem:[#allocation2 + $0xa] sm:$0xff]
    %v415 = vld [vmem:[#allocation2 + $0x12] sm:$0xff]
    %v416 = vld [vmem:[#allocation2 + $0x1a] sm:$0xff]
    %v417 = vld [vmem:[#allocation2 + $0x2a] sm:$0xff]
    %v418 = vld [vmem:[#allocation2 + $0x32] sm:$0xff]
    %v419 = vld [vmem:[#allocation2 + $0x3a] sm:$0xff]
    %v420 = vld [vmem:[#allocation2 + $0x42] sm:$0xff]
    %s421 = scalar_lea.vmem [#allocation7], 128
    %v422 = vld [vmem:[%s421] sm:$0xff]
    %v423 = vld [vmem:[%s421 + $0x8] sm:$0xff]
    %v424 = vld [vmem:[%s421 + $0x10] sm:$0xff]
    %v425 = vld [vmem:[%s421 + $0x18] sm:$0xff]
    %v426 = vld [vmem:[%s421 + $0x20] sm:$0xff]
    %v427 = vld [vmem:[%s421 + $0x28] sm:$0xff]
    %v428 = vld [vmem:[%s421 + $0x30] sm:$0xff]
    %v429 = vld [vmem:[%s421 + $0x38] sm:$0xff]
    %v431 = vsel %vm159, %v413, 0
    %v434 = vsel %vm159, %v414, 0
    %v437 = vsel %vm159, %v415, 0
    %v440 = vsel %vm159, %v416, 0
    %v443 = vsel %vm159, %v417, 0
    %v446 = vsel %vm159, %v418, 0
    %v449 = vsel %vm159, %v419, 0
    %v452 = vsel %vm159, %v420, 0
    %454 = vmatpush.msra.mxu0 0.0
    %455 = vmatpush.msra.mxu0 0.0
    %456 = vmatpush.msra.mxu0 0.0
    %457 = vmatpush.msra.mxu0 0.0
    %458 = vmatpush.msra.mxu0 0.0
    %459 = vmatpush.msra.mxu0 0.0
    %460 = vmatpush.msra.mxu0 0.0
    %461 = vmatpush.msra.mxu0 0.0
    %462 = vmatpush.msra.mxu0 0.0
    %463 = vmatpush.msra.mxu0 0.0
    %464 = vmatpush.msra.mxu0 0.0
    %465 = vmatpush.msra.mxu0 0.0
    %466 = vmatpush.msra.mxu0 %v428
    %467 = vmatpush.msra.mxu0 %v426
    %468 = vmatpush.msra.mxu0 %v424
    %469 = vmatpush.msra.mxu0 %v422
    %470 = vmatmul.f32.gmra.mxu0 %v431
    %v471 = vpop.f32.mrf.mxu0
    %v472 = vadd.f32 0.0, %v471
    %473 = vmatmul.f32.gmra.mxu0 %v434
    %v474 = vpop.f32.mrf.mxu0
    %v475 = vadd.f32 0.0, %v474
    %476 = vmatmul.f32.gmra.mxu0 %v437
    %v477 = vpop.f32.mrf.mxu0
    %v478 = vadd.f32 0.0, %v477
    %479 = vmatmul.f32.gmra.mxu0 %v440
    %v480 = vpop.f32.mrf.mxu0
    %v481 = vadd.f32 0.0, %v480
    %482 = vmatmul.f32.gmra.mxu0 %v443
    %v483 = vpop.f32.mrf.mxu0
    %v484 = vadd.f32 0.0, %v483
    %485 = vmatmul.f32.gmra.mxu0 %v446
    %v486 = vpop.f32.mrf.mxu0
    %v487 = vadd.f32 0.0, %v486
    %488 = vmatmul.f32.gmra.mxu0 %v449
    %v489 = vpop.f32.mrf.mxu0
    %v490 = vadd.f32 0.0, %v489
    %491 = vmatmul.f32.gmra.mxu0 %v452
    %v492 = vpop.f32.mrf.mxu0
    %v493 = vadd.f32 0.0, %v492
    %494 = vdwg.mxu0
    %495 = vmatpush.msra.mxu0 0.0
    %496 = vmatpush.msra.mxu0 0.0
    %497 = vmatpush.msra.mxu0 0.0
    %498 = vmatpush.msra.mxu0 0.0
    %499 = vmatpush.msra.mxu0 0.0
    %500 = vmatpush.msra.mxu0 0.0
    %501 = vmatpush.msra.mxu0 0.0
    %502 = vmatpush.msra.mxu0 0.0
    %503 = vmatpush.msra.mxu0 0.0
    %504 = vmatpush.msra.mxu0 0.0
    %505 = vmatpush.msra.mxu0 0.0
    %506 = vmatpush.msra.mxu0 0.0
    %507 = vmatpush.msra.mxu0 %v429
    %508 = vmatpush.msra.mxu0 %v427
    %509 = vmatpush.msra.mxu0 %v425
    %510 = vmatpush.msra.mxu0 %v423
    %511 = vmatmul.f32.gmra.mxu0 %v431
    %v512 = vpop.f32.mrf.mxu0
    %v513 = vadd.f32 0.0, %v512
    %514 = vmatmul.f32.gmra.mxu0 %v434
    %v515 = vpop.f32.mrf.mxu0
    %v516 = vadd.f32 0.0, %v515
    %517 = vmatmul.f32.gmra.mxu0 %v437
    %v518 = vpop.f32.mrf.mxu0
    %v519 = vadd.f32 0.0, %v518
    %520 = vmatmul.f32.gmra.mxu0 %v440
    %v521 = vpop.f32.mrf.mxu0
    %v522 = vadd.f32 0.0, %v521
    %523 = vmatmul.f32.gmra.mxu0 %v443
    %v524 = vpop.f32.mrf.mxu0
    %v525 = vadd.f32 0.0, %v524
    %526 = vmatmul.f32.gmra.mxu0 %v446
    %v527 = vpop.f32.mrf.mxu0
    %v528 = vadd.f32 0.0, %v527
    %529 = vmatmul.f32.gmra.mxu0 %v449
    %v530 = vpop.f32.mrf.mxu0
    %v531 = vadd.f32 0.0, %v530
    %532 = vmatmul.f32.gmra.mxu0 %v452
    %v533 = vpop.f32.mrf.mxu0
    %v534 = vadd.f32 0.0, %v533
    %535 = vdwg.mxu0
    %v536 = vadd.f32 %v349, %v472
    %v537 = vadd.f32 %v390, %v513
    %v538 = vadd.f32 %v352, %v475
    %v539 = vadd.f32 %v393, %v516
    %v540 = vadd.f32 %v355, %v478
    %v541 = vadd.f32 %v396, %v519
    %v542 = vadd.f32 %v358, %v481
    %v543 = vadd.f32 %v399, %v522
    %v544 = vadd.f32 %v361, %v484
    %v545 = vadd.f32 %v402, %v525
    %v546 = vadd.f32 %v364, %v487
    %v547 = vadd.f32 %v405, %v528
    %v548 = vadd.f32 %v367, %v490
    %v549 = vadd.f32 %v408, %v531
    %v550 = vadd.f32 %v370, %v493
    %v551 = vadd.f32 %v411, %v534
    %v552 = vld [vmem:[#allocation2 + $0x3] sm:$0xff]
    %v553 = vld [vmem:[#allocation2 + $0xb] sm:$0xff]
    %v554 = vld [vmem:[#allocation2 + $0x13] sm:$0xff]
    %v555 = vld [vmem:[#allocation2 + $0x1b] sm:$0xff]
    %v556 = vld [vmem:[#allocation2 + $0x2b] sm:$0xff]
    %v557 = vld [vmem:[#allocation2 + $0x33] sm:$0xff]
    %v558 = vld [vmem:[#allocation2 + $0x3b] sm:$0xff]
    %v559 = vld [vmem:[#allocation2 + $0x43] sm:$0xff]
    %s560 = scalar_lea.vmem [#allocation7], 192
    %v561 = vld [vmem:[%s560] sm:$0xff]
    %v562 = vld [vmem:[%s560 + $0x8] sm:$0xff]
    %v563 = vld [vmem:[%s560 + $0x10] sm:$0xff]
    %v564 = vld [vmem:[%s560 + $0x18] sm:$0xff]
    %v565 = vld [vmem:[%s560 + $0x20] sm:$0xff]
    %v566 = vld [vmem:[%s560 + $0x28] sm:$0xff]
    %v567 = vld [vmem:[%s560 + $0x30] sm:$0xff]
    %v568 = vld [vmem:[%s560 + $0x38] sm:$0xff]
    %v570 = vsel %vm159, %v552, 0
    %v573 = vsel %vm159, %v553, 0
    %v576 = vsel %vm159, %v554, 0
    %v579 = vsel %vm159, %v555, 0
    %v582 = vsel %vm159, %v556, 0
    %v585 = vsel %vm159, %v557, 0
    %v588 = vsel %vm159, %v558, 0
    %v591 = vsel %vm159, %v559, 0
    %593 = vmatpush.msra.mxu0 0.0
    %594 = vmatpush.msra.mxu0 0.0
    %595 = vmatpush.msra.mxu0 0.0
    %596 = vmatpush.msra.mxu0 0.0
    %597 = vmatpush.msra.mxu0 0.0
    %598 = vmatpush.msra.mxu0 0.0
    %599 = vmatpush.msra.mxu0 0.0
    %600 = vmatpush.msra.mxu0 0.0
    %601 = vmatpush.msra.mxu0 0.0
    %602 = vmatpush.msra.mxu0 0.0
    %603 = vmatpush.msra.mxu0 0.0
    %604 = vmatpush.msra.mxu0 0.0
    %605 = vmatpush.msra.mxu0 %v567
    %606 = vmatpush.msra.mxu0 %v565
    %607 = vmatpush.msra.mxu0 %v563
    %608 = vmatpush.msra.mxu0 %v561
    %609 = vmatmul.f32.gmra.mxu0 %v570
    %v610 = vpop.f32.mrf.mxu0
    %v611 = vadd.f32 0.0, %v610
    %612 = vmatmul.f32.gmra.mxu0 %v573
    %v613 = vpop.f32.mrf.mxu0
    %v614 = vadd.f32 0.0, %v613
    %615 = vmatmul.f32.gmra.mxu0 %v576
    %v616 = vpop.f32.mrf.mxu0
    %v617 = vadd.f32 0.0, %v616
    %618 = vmatmul.f32.gmra.mxu0 %v579
    %v619 = vpop.f32.mrf.mxu0
    %v620 = vadd.f32 0.0, %v619
    %621 = vmatmul.f32.gmra.mxu0 %v582
    %v622 = vpop.f32.mrf.mxu0
    %v623 = vadd.f32 0.0, %v622
    %624 = vmatmul.f32.gmra.mxu0 %v585
    %v625 = vpop.f32.mrf.mxu0
    %v626 = vadd.f32 0.0, %v625
    %627 = vmatmul.f32.gmra.mxu0 %v588
    %v628 = vpop.f32.mrf.mxu0
    %v629 = vadd.f32 0.0, %v628
    %630 = vmatmul.f32.gmra.mxu0 %v591
    %v631 = vpop.f32.mrf.mxu0
    %v632 = vadd.f32 0.0, %v631
    %633 = vdwg.mxu0
    %634 = vmatpush.msra.mxu0 0.0
    %635 = vmatpush.msra.mxu0 0.0
    %636 = vmatpush.msra.mxu0 0.0
    %637 = vmatpush.msra.mxu0 0.0
    %638 = vmatpush.msra.mxu0 0.0
    %639 = vmatpush.msra.mxu0 0.0
    %640 = vmatpush.msra.mxu0 0.0
    %641 = vmatpush.msra.mxu0 0.0
    %642 = vmatpush.msra.mxu0 0.0
    %643 = vmatpush.msra.mxu0 0.0
    %644 = vmatpush.msra.mxu0 0.0
    %645 = vmatpush.msra.mxu0 0.0
    %646 = vmatpush.msra.mxu0 %v568
    %647 = vmatpush.msra.mxu0 %v566
    %648 = vmatpush.msra.mxu0 %v564
    %649 = vmatpush.msra.mxu0 %v562
    %650 = vmatmul.f32.gmra.mxu0 %v570
    %v651 = vpop.f32.mrf.mxu0
    %v652 = vadd.f32 0.0, %v651
    %653 = vmatmul.f32.gmra.mxu0 %v573
    %v654 = vpop.f32.mrf.mxu0
    %v655 = vadd.f32 0.0, %v654
    %656 = vmatmul.f32.gmra.mxu0 %v576
    %v657 = vpop.f32.mrf.mxu0
    %v658 = vadd.f32 0.0, %v657
    %659 = vmatmul.f32.gmra.mxu0 %v579
    %v660 = vpop.f32.mrf.mxu0
    %v661 = vadd.f32 0.0, %v660
    %662 = vmatmul.f32.gmra.mxu0 %v582
    %v663 = vpop.f32.mrf.mxu0
    %v664 = vadd.f32 0.0, %v663
    %665 = vmatmul.f32.gmra.mxu0 %v585
    %v666 = vpop.f32.mrf.mxu0
    %v667 = vadd.f32 0.0, %v666
    %668 = vmatmul.f32.gmra.mxu0 %v588
    %v669 = vpop.f32.mrf.mxu0
    %v670 = vadd.f32 0.0, %v669
    %671 = vmatmul.f32.gmra.mxu0 %v591
    %v672 = vpop.f32.mrf.mxu0
    %v673 = vadd.f32 0.0, %v672
    %674 = vdwg.mxu0
    %v675 = vadd.f32 %v536, %v611
    %v676 = vadd.f32 %v537, %v652
    %v677 = vadd.f32 %v538, %v614
    %v678 = vadd.f32 %v539, %v655
    %v679 = vadd.f32 %v540, %v617
    %v680 = vadd.f32 %v541, %v658
    %v681 = vadd.f32 %v542, %v620
    %v682 = vadd.f32 %v543, %v661
    %v683 = vadd.f32 %v544, %v623
    %v684 = vadd.f32 %v545, %v664
    %v685 = vadd.f32 %v546, %v626
    %v686 = vadd.f32 %v547, %v667
    %v687 = vadd.f32 %v548, %v629
    %v688 = vadd.f32 %v549, %v670
    %v689 = vadd.f32 %v550, %v632
    %v690 = vadd.f32 %v551, %v673
    %v691 = vld [vmem:[#allocation2 + $0x4] sm:$0xff]
    %v692 = vld [vmem:[#allocation2 + $0xc] sm:$0xff]
    %v693 = vld [vmem:[#allocation2 + $0x14] sm:$0xff]
    %v694 = vld [vmem:[#allocation2 + $0x1c] sm:$0xff]
    %v695 = vld [vmem:[#allocation2 + $0x2c] sm:$0xff]
    %v696 = vld [vmem:[#allocation2 + $0x34] sm:$0xff]
    %v697 = vld [vmem:[#allocation2 + $0x3c] sm:$0xff]
    %v698 = vld [vmem:[#allocation2 + $0x44] sm:$0xff]
    %s699 = scalar_lea.vmem [#allocation7], 256
    %v700 = vld [vmem:[%s699] sm:$0xff]
    %v701 = vld [vmem:[%s699 + $0x8] sm:$0xff]
    %v702 = vld [vmem:[%s699 + $0x10] sm:$0xff]
    %v703 = vld [vmem:[%s699 + $0x18] sm:$0xff]
    %v704 = vld [vmem:[%s699 + $0x20] sm:$0xff]
    %v705 = vld [vmem:[%s699 + $0x28] sm:$0xff]
    %v706 = vld [vmem:[%s699 + $0x30] sm:$0xff]
    %v707 = vld [vmem:[%s699 + $0x38] sm:$0xff]
    %v709 = vsel %vm159, %v691, 0
    %v712 = vsel %vm159, %v692, 0
    %v715 = vsel %vm159, %v693, 0
    %v718 = vsel %vm159, %v694, 0
    %v721 = vsel %vm159, %v695, 0
    %v724 = vsel %vm159, %v696, 0
    %v727 = vsel %vm159, %v697, 0
    %v730 = vsel %vm159, %v698, 0
    %732 = vmatpush.msra.mxu0 0.0
    %733 = vmatpush.msra.mxu0 0.0
    %734 = vmatpush.msra.mxu0 0.0
    %735 = vmatpush.msra.mxu0 0.0
    %736 = vmatpush.msra.mxu0 0.0
    %737 = vmatpush.msra.mxu0 0.0
    %738 = vmatpush.msra.mxu0 0.0
    %739 = vmatpush.msra.mxu0 0.0
    %740 = vmatpush.msra.mxu0 0.0
    %741 = vmatpush.msra.mxu0 0.0
    %742 = vmatpush.msra.mxu0 0.0
    %743 = vmatpush.msra.mxu0 0.0
    %744 = vmatpush.msra.mxu0 %v706
    %745 = vmatpush.msra.mxu0 %v704
    %746 = vmatpush.msra.mxu0 %v702
    %747 = vmatpush.msra.mxu0 %v700
    %748 = vmatmul.f32.gmra.mxu0 %v709
    %v749 = vpop.f32.mrf.mxu0
    %v750 = vadd.f32 0.0, %v749
    %751 = vmatmul.f32.gmra.mxu0 %v712
    %v752 = vpop.f32.mrf.mxu0
    %v753 = vadd.f32 0.0, %v752
    %754 = vmatmul.f32.gmra.mxu0 %v715
    %v755 = vpop.f32.mrf.mxu0
    %v756 = vadd.f32 0.0, %v755
    %757 = vmatmul.f32.gmra.mxu0 %v718
    %v758 = vpop.f32.mrf.mxu0
    %v759 = vadd.f32 0.0, %v758
    %760 = vmatmul.f32.gmra.mxu0 %v721
    %v761 = vpop.f32.mrf.mxu0
    %v762 = vadd.f32 0.0, %v761
    %763 = vmatmul.f32.gmra.mxu0 %v724
    %v764 = vpop.f32.mrf.mxu0
    %v765 = vadd.f32 0.0, %v764
    %766 = vmatmul.f32.gmra.mxu0 %v727
    %v767 = vpop.f32.mrf.mxu0
    %v768 = vadd.f32 0.0, %v767
    %769 = vmatmul.f32.gmra.mxu0 %v730
    %v770 = vpop.f32.mrf.mxu0
    %v771 = vadd.f32 0.0, %v770
    %772 = vdwg.mxu0
    %773 = vmatpush.msra.mxu0 0.0
    %774 = vmatpush.msra.mxu0 0.0
    %775 = vmatpush.msra.mxu0 0.0
    %776 = vmatpush.msra.mxu0 0.0
    %777 = vmatpush.msra.mxu0 0.0
    %778 = vmatpush.msra.mxu0 0.0
    %779 = vmatpush.msra.mxu0 0.0
    %780 = vmatpush.msra.mxu0 0.0
    %781 = vmatpush.msra.mxu0 0.0
    %782 = vmatpush.msra.mxu0 0.0
    %783 = vmatpush.msra.mxu0 0.0
    %784 = vmatpush.msra.mxu0 0.0
    %785 = vmatpush.msra.mxu0 %v707
    %786 = vmatpush.msra.mxu0 %v705
    %787 = vmatpush.msra.mxu0 %v703
    %788 = vmatpush.msra.mxu0 %v701
    %789 = vmatmul.f32.gmra.mxu0 %v709
    %v790 = vpop.f32.mrf.mxu0
    %v791 = vadd.f32 0.0, %v790
    %792 = vmatmul.f32.gmra.mxu0 %v712
    %v793 = vpop.f32.mrf.mxu0
    %v794 = vadd.f32 0.0, %v793
    %795 = vmatmul.f32.gmra.mxu0 %v715
    %v796 = vpop.f32.mrf.mxu0
    %v797 = vadd.f32 0.0, %v796
    %798 = vmatmul.f32.gmra.mxu0 %v718
    %v799 = vpop.f32.mrf.mxu0
    %v800 = vadd.f32 0.0, %v799
    %801 = vmatmul.f32.gmra.mxu0 %v721
    %v802 = vpop.f32.mrf.mxu0
    %v803 = vadd.f32 0.0, %v802
    %804 = vmatmul.f32.gmra.mxu0 %v724
    %v805 = vpop.f32.mrf.mxu0
    %v806 = vadd.f32 0.0, %v805
    %807 = vmatmul.f32.gmra.mxu0 %v727
    %v808 = vpop.f32.mrf.mxu0
    %v809 = vadd.f32 0.0, %v808
    %810 = vmatmul.f32.gmra.mxu0 %v730
    %v811 = vpop.f32.mrf.mxu0
    %v812 = vadd.f32 0.0, %v811
    %813 = vdwg.mxu0
    %v814 = vadd.f32 %v675, %v750
    %v815 = vadd.f32 %v676, %v791
    %v816 = vadd.f32 %v677, %v753
    %v817 = vadd.f32 %v678, %v794
    %v818 = vadd.f32 %v679, %v756
    %v819 = vadd.f32 %v680, %v797
    %v820 = vadd.f32 %v681, %v759
    %v821 = vadd.f32 %v682, %v800
    %v822 = vadd.f32 %v683, %v762
    %v823 = vadd.f32 %v684, %v803
    %v824 = vadd.f32 %v685, %v765
    %v825 = vadd.f32 %v686, %v806
    %v826 = vadd.f32 %v687, %v768
    %v827 = vadd.f32 %v688, %v809
    %v828 = vadd.f32 %v689, %v771
    %v829 = vadd.f32 %v690, %v812
    %v830 = vld [vmem:[#allocation9] sm:$0x3]
    %v832 = vperm.slane %v830, 0
    %v833 = vperm.slane %v830, 1
    %v836 = vadd.f32 %v814, %v832
    %v837 = vadd.f32 %v815, %v833
    %v838 = vadd.f32 %v816, %v832
    %v839 = vadd.f32 %v817, %v833
    %v840 = vadd.f32 %v818, %v832
    %v841 = vadd.f32 %v819, %v833
    %v842 = vadd.f32 %v820, %v832
    %v843 = vadd.f32 %v821, %v833
    %v844 = vadd.f32 %v822, %v832
    %v845 = vadd.f32 %v823, %v833
    %v846 = vadd.f32 %v824, %v832
    %v847 = vadd.f32 %v825, %v833
    %v848 = vadd.f32 %v826, %v832
    %v849 = vadd.f32 %v827, %v833
    %v850 = vadd.f32 %v828, %v832
    %v851 = vadd.f32 %v829, %v833
    %v852 = vmax.f32 %v836, 0.0
    %v853 = vmax.f32 %v837, 0.0
    %v854 = vmax.f32 %v838, 0.0
    %v855 = vmax.f32 %v839, 0.0
    %v856 = vmax.f32 %v840, 0.0
    %v857 = vmax.f32 %v841, 0.0
    %v858 = vmax.f32 %v842, 0.0
    %v859 = vmax.f32 %v843, 0.0
    %v860 = vmax.f32 %v844, 0.0
    %v861 = vmax.f32 %v845, 0.0
    %v862 = vmax.f32 %v846, 0.0
    %v863 = vmax.f32 %v847, 0.0
    %v864 = vmax.f32 %v848, 0.0
    %v865 = vmax.f32 %v849, 0.0
    %v866 = vmax.f32 %v850, 0.0
    %v867 = vmax.f32 %v851, 0.0
    %v868 = vmax.f32 %v852, %v853
    %v869 = vmax.f32 %v854, %v855
    %v870 = vmax.f32 %v856, %v857
    %v871 = vmax.f32 %v858, %v859
    %v872 = vmax.f32 %v860, %v861
    %v873 = vmax.f32 %v862, %v863
    %v874 = vmax.f32 %v864, %v865
    %v875 = vmax.f32 %v866, %v867
    %v884 = vrot.slane %v868, 2
    %v885 = vrot.slane %v868, 4
    %v886 = vrot.slane %v868, 6
    %v887 = vrot.slane %v869, 2
    %v888 = vrot.slane %v869, 4
    %v889 = vrot.slane %v869, 6
    %v890 = vrot.slane %v870, 2
    %v891 = vrot.slane %v870, 4
    %v892 = vrot.slane %v870, 6
    %v893 = vrot.slane %v871, 2
    %v894 = vrot.slane %v871, 4
    %v895 = vrot.slane %v871, 6
    %v896 = vrot.slane %v872, 2
    %v897 = vrot.slane %v872, 4
    %v898 = vrot.slane %v872, 6
    %v899 = vrot.slane %v873, 2
    %v900 = vrot.slane %v873, 4
    %v901 = vrot.slane %v873, 6
    %v902 = vrot.slane %v874, 2
    %v903 = vrot.slane %v874, 4
    %v904 = vrot.slane %v874, 6
    %v905 = vrot.slane %v875, 2
    %v906 = vrot.slane %v875, 4
    %v907 = vrot.slane %v875, 6
    %v932 = vrot.slane %v868, 7
    %v933 = vrot.slane %v932, 2
    %v934 = vrot.slane %v884, 7
    %v935 = vrot.slane %v934, 2
    %v936 = vrot.slane %v885, 7
    %v937 = vrot.slane %v936, 2
    %v938 = vrot.slane %v886, 7
    %v939 = vrot.slane %v938, 2
    %v940 = vrot.slane %v869, 7
    %v941 = vrot.slane %v940, 2
    %v942 = vrot.slane %v887, 7
    %v943 = vrot.slane %v942, 2
    %v944 = vrot.slane %v888, 7
    %v945 = vrot.slane %v944, 2
    %v946 = vrot.slane %v889, 7
    %v947 = vrot.slane %v946, 2
    %v948 = vrot.slane %v870, 7
    %v949 = vrot.slane %v948, 2
    %v950 = vrot.slane %v890, 7
    %v951 = vrot.slane %v950, 2
    %v952 = vrot.slane %v891, 7
    %v953 = vrot.slane %v952, 2
    %v954 = vrot.slane %v892, 7
    %v955 = vrot.slane %v954, 2
    %v956 = vrot.slane %v871, 7
    %v957 = vrot.slane %v956, 2
    %v958 = vrot.slane %v893, 7
    %v959 = vrot.slane %v958, 2
    %v960 = vrot.slane %v894, 7
    %v961 = vrot.slane %v960, 2
    %v962 = vrot.slane %v895, 7
    %v963 = vrot.slane %v962, 2
    %v964 = vrot.slane %v872, 7
    %v965 = vrot.slane %v964, 2
    %v966 = vrot.slane %v896, 7
    %v967 = vrot.slane %v966, 2
    %v968 = vrot.slane %v897, 7
    %v969 = vrot.slane %v968, 2
    %v970 = vrot.slane %v898, 7
    %v971 = vrot.slane %v970, 2
    %v972 = vrot.slane %v873, 7
    %v973 = vrot.slane %v972, 2
    %v974 = vrot.slane %v899, 7
    %v975 = vrot.slane %v974, 2
    %v976 = vrot.slane %v900, 7
    %v977 = vrot.slane %v976, 2
    %v978 = vrot.slane %v901, 7
    %v979 = vrot.slane %v978, 2
    %v980 = vrot.slane %v874, 7
    %v981 = vrot.slane %v980, 2
    %v982 = vrot.slane %v902, 7
    %v983 = vrot.slane %v982, 2
    %v984 = vrot.slane %v903, 7
    %v985 = vrot.slane %v984, 2
    %v986 = vrot.slane %v904, 7
    %v987 = vrot.slane %v986, 2
    %v988 = vrot.slane %v875, 7
    %v989 = vrot.slane %v988, 2
    %v990 = vrot.slane %v905, 7
    %v991 = vrot.slane %v990, 2
    %v992 = vrot.slane %v906, 7
    %v993 = vrot.slane %v992, 2
    %v994 = vrot.slane %v907, 7
    %v995 = vrot.slane %v994, 2
    %v1028 = vmax.f32 %v868, %v933
    %v1029 = vmax.f32 %v884, %v935
    %v1030 = vmax.f32 %v885, %v937
    %v1031 = vmax.f32 %v886, %v939
    %v1032 = vmax.f32 %v869, %v941
    %v1033 = vmax.f32 %v887, %v943
    %v1034 = vmax.f32 %v888, %v945
    %v1035 = vmax.f32 %v889, %v947
    %v1036 = vmax.f32 %v870, %v949
    %v1037 = vmax.f32 %v890, %v951
    %v1038 = vmax.f32 %v891, %v953
    %v1039 = vmax.f32 %v892, %v955
    %v1040 = vmax.f32 %v871, %v957
    %v1041 = vmax.f32 %v893, %v959
    %v1042 = vmax.f32 %v894, %v961
    %v1043 = vmax.f32 %v895, %v963
    %v1044 = vmax.f32 %v872, %v965
    %v1045 = vmax.f32 %v896, %v967
    %v1046 = vmax.f32 %v897, %v969
    %v1047 = vmax.f32 %v898, %v971
    %v1048 = vmax.f32 %v873, %v973
    %v1049 = vmax.f32 %v899, %v975
    %v1050 = vmax.f32 %v900, %v977
    %v1051 = vmax.f32 %v901, %v979
    %v1052 = vmax.f32 %v874, %v981
    %v1053 = vmax.f32 %v902, %v983
    %v1054 = vmax.f32 %v903, %v985
    %v1055 = vmax.f32 %v904, %v987
    %v1056 = vmax.f32 %v875, %v989
    %v1057 = vmax.f32 %v905, %v991
    %v1058 = vmax.f32 %v906, %v993
    %v1059 = vmax.f32 %v907, %v995
    %1060 = vst [vmem:[#allocation3] sm:$0x3] 0.0
    %1061 = vst [vmem:[#allocation3 + $0x18] sm:$0x3] 0.0
    %1062 = vst [vmem:[#allocation3 + $0x12] sm:$0x3] 0.0
    %1063 = vst [vmem:[#allocation3 + $0x2a] sm:$0x3] 0.0
    %v1096 = vperm.slane %v1028, 0
    %v1097 = vperm.slane %v1029, 0
    %v1098 = vperm.slane %v1030, 0
    %v1099 = vperm.slane %v1031, 0
    %v1100 = vperm.slane %v1032, 0
    %v1101 = vperm.slane %v1033, 0
    %v1102 = vperm.slane %v1034, 0
    %v1103 = vperm.slane %v1035, 0
    %v1104 = vperm.slane %v1036, 0
    %v1105 = vperm.slane %v1037, 0
    %v1106 = vperm.slane %v1038, 0
    %v1107 = vperm.slane %v1039, 0
    %v1108 = vperm.slane %v1040, 0
    %v1109 = vperm.slane %v1041, 0
    %v1110 = vperm.slane %v1042, 0
    %v1111 = vperm.slane %v1043, 0
    %v1112 = vperm.slane %v1044, 0
    %v1113 = vperm.slane %v1045, 0
    %v1114 = vperm.slane %v1046, 0
    %v1115 = vperm.slane %v1047, 0
    %v1116 = vperm.slane %v1048, 0
    %v1117 = vperm.slane %v1049, 0
    %v1118 = vperm.slane %v1050, 0
    %v1119 = vperm.slane %v1051, 0
    %v1120 = vperm.slane %v1052, 0
    %v1121 = vperm.slane %v1053, 0
    %v1122 = vperm.slane %v1054, 0
    %v1123 = vperm.slane %v1055, 0
    %v1124 = vperm.slane %v1056, 0
    %v1125 = vperm.slane %v1057, 0
    %v1126 = vperm.slane %v1058, 0
    %v1127 = vperm.slane %v1059, 0
    %vm1128 = vcmask 1041409
    %v1129 = vsel %vm1128, %v1097, %v1096
    %vm1130 = vcmask 1042434
    %v1131 = vsel %vm1130, %v1098, %v1129
    %vm1132 = vcmask 1043459
    %v1133 = vsel %vm1132, %v1099, %v1131
    %vm1134 = vcmask 1044484
    %v1135 = vsel %vm1134, %v1100, %v1133
    %vm1136 = vcmask 1045509
    %v1137 = vsel %vm1136, %v1101, %v1135
    %vm1138 = vcmask 1046534
    %v1139 = vsel %vm1138, %v1102, %v1137
    %vm1140 = vcmask 1047559
    %v1141 = vsel %vm1140, %v1103, %v1139
    %v1142 = vsel %vm1128, %v1105, %v1104
    %v1143 = vsel %vm1130, %v1106, %v1142
    %v1144 = vsel %vm1132, %v1107, %v1143
    %v1145 = vsel %vm1134, %v1108, %v1144
    %v1146 = vsel %vm1136, %v1109, %v1145
    %v1147 = vsel %vm1138, %v1110, %v1146
    %v1148 = vsel %vm1140, %v1111, %v1147
    %v1149 = vsel %vm1128, %v1113, %v1112
    %v1150 = vsel %vm1130, %v1114, %v1149
    %v1151 = vsel %vm1132, %v1115, %v1150
    %v1152 = vsel %vm1134, %v1116, %v1151
    %v1153 = vsel %vm1136, %v1117, %v1152
    %v1154 = vsel %vm1138, %v1118, %v1153
    %v1155 = vsel %vm1140, %v1119, %v1154
    %v1156 = vsel %vm1128, %v1121, %v1120
    %v1157 = vsel %vm1130, %v1122, %v1156
    %v1158 = vsel %vm1132, %v1123, %v1157
    %v1159 = vsel %vm1134, %v1124, %v1158
    %v1160 = vsel %vm1136, %v1125, %v1159
    %v1161 = vsel %vm1138, %v1126, %v1160
    %v1162 = vsel %vm1140, %v1127, %v1161
    %1167 = vst [vmem:[#allocation3 + $0x2] sm:$0xff] %v1141
    %1168 = vst [vmem:[#allocation3 + $0xa] sm:$0xff] %v1148
    %1169 = vst [vmem:[#allocation3 + $0x1a] sm:$0xff] %v1155
    %1170 = vst [vmem:[#allocation3 + $0x22] sm:$0xff] %v1162
    %v1171 = vld [vmem:[#allocation3] sm:$0xff]
    %v1172 = vld [vmem:[#allocation3 + $0x8] sm:$0xff]
    %v1173 = vld [vmem:[#allocation3 + $0x18] sm:$0xff]
    %v1174 = vld [vmem:[#allocation3 + $0x20] sm:$0xff]
    %v1175 = vld [vmem:[#allocation10] sm:$0xff]
    %v1176 = vld [vmem:[#allocation10 + $0x8] sm:$0xff]
    %v1177 = vld [vmem:[#allocation10 + $0x10] sm:$0xff]
    %v1178 = vld [vmem:[#allocation10 + $0x18] sm:$0xff]
    %v1179 = vld [vmem:[#allocation10 + $0x20] sm:$0xff]
    %v1180 = vld [vmem:[#allocation10 + $0x28] sm:$0xff]
    %v1181 = vld [vmem:[#allocation10 + $0x30] sm:$0xff]
    %v1182 = vld [vmem:[#allocation10 + $0x38] sm:$0xff]
    %v1183 = vld [vmem:[#allocation10 + $0x40] sm:$0xff]
    %v1184 = vld [vmem:[#allocation10 + $0x48] sm:$0xff]
    %v1185 = vld [vmem:[#allocation10 + $0x50] sm:$0xff]
    %v1186 = vld [vmem:[#allocation10 + $0x58] sm:$0xff]
    %v1187 = vld [vmem:[#allocation10 + $0x60] sm:$0xff]
    %v1188 = vld [vmem:[#allocation10 + $0x68] sm:$0xff]
    %v1189 = vld [vmem:[#allocation10 + $0x70] sm:$0xff]
    %v1190 = vld [vmem:[#allocation10 + $0x78] sm:$0xff]
    %v1191 = vld [vmem:[#allocation10 + $0x80] sm:$0xff]
    %v1192 = vld [vmem:[#allocation10 + $0x88] sm:$0xff]
    %v1193 = vld [vmem:[#allocation10 + $0x90] sm:$0xff]
    %v1194 = vld [vmem:[#allocation10 + $0x98] sm:$0xff]
    %v1195 = vld [vmem:[#allocation10 + $0xa0] sm:$0xff]
    %v1196 = vld [vmem:[#allocation10 + $0xa8] sm:$0xff]
    %v1197 = vld [vmem:[#allocation10 + $0xb0] sm:$0xff]
    %v1198 = vld [vmem:[#allocation10 + $0xb8] sm:$0xff]
    %v1199 = vld [vmem:[#allocation10 + $0xc0] sm:$0xff]
    %v1200 = vld [vmem:[#allocation10 + $0xc8] sm:$0xff]
    %v1201 = vld [vmem:[#allocation10 + $0xd0] sm:$0xff]
    %v1202 = vld [vmem:[#allocation10 + $0xd8] sm:$0xff]
    %v1203 = vld [vmem:[#allocation10 + $0xe0] sm:$0xff]
    %v1204 = vld [vmem:[#allocation10 + $0xe8] sm:$0xff]
    %v1205 = vld [vmem:[#allocation10 + $0xf0] sm:$0xff]
    %v1206 = vld [vmem:[#allocation10 + $0xf8] sm:$0xff]
    %v1207 = vld [vmem:[#allocation3 + $0x1] sm:$0xff]
    %v1208 = vld [vmem:[#allocation3 + $0x9] sm:$0xff]
    %v1209 = vld [vmem:[#allocation3 + $0x19] sm:$0xff]
    %v1210 = vld [vmem:[#allocation3 + $0x21] sm:$0xff]
    %s1211 = scalar_lea.vmem [#allocation10], 256
    %v1212 = vld [vmem:[%s1211] sm:$0xff]
    %v1213 = vld [vmem:[%s1211 + $0x8] sm:$0xff]
    %v1214 = vld [vmem:[%s1211 + $0x10] sm:$0xff]
    %v1215 = vld [vmem:[%s1211 + $0x18] sm:$0xff]
    %v1216 = vld [vmem:[%s1211 + $0x20] sm:$0xff]
    %v1217 = vld [vmem:[%s1211 + $0x28] sm:$0xff]
    %v1218 = vld [vmem:[%s1211 + $0x30] sm:$0xff]
    %v1219 = vld [vmem:[%s1211 + $0x38] sm:$0xff]
    %v1220 = vld [vmem:[%s1211 + $0x40] sm:$0xff]
    %v1221 = vld [vmem:[%s1211 + $0x48] sm:$0xff]
    %v1222 = vld [vmem:[%s1211 + $0x50] sm:$0xff]
    %v1223 = vld [vmem:[%s1211 + $0x58] sm:$0xff]
    %v1224 = vld [vmem:[%s1211 + $0x60] sm:$0xff]
    %v1225 = vld [vmem:[%s1211 + $0x68] sm:$0xff]
    %v1226 = vld [vmem:[%s1211 + $0x70] sm:$0xff]
    %v1227 = vld [vmem:[%s1211 + $0x78] sm:$0xff]
    %v1228 = vld [vmem:[%s1211 + $0x80] sm:$0xff]
    %v1229 = vld [vmem:[%s1211 + $0x88] sm:$0xff]
    %v1230 = vld [vmem:[%s1211 + $0x90] sm:$0xff]
    %v1231 = vld [vmem:[%s1211 + $0x98] sm:$0xff]
    %v1232 = vld [vmem:[%s1211 + $0xa0] sm:$0xff]
    %v1233 = vld [vmem:[%s1211 + $0xa8] sm:$0xff]
    %v1234 = vld [vmem:[%s1211 + $0xb0] sm:$0xff]
    %v1235 = vld [vmem:[%s1211 + $0xb8] sm:$0xff]
    %v1236 = vld [vmem:[%s1211 + $0xc0] sm:$0xff]
    %v1237 = vld [vmem:[%s1211 + $0xc8] sm:$0xff]
    %v1238 = vld [vmem:[%s1211 + $0xd0] sm:$0xff]
    %v1239 = vld [vmem:[%s1211 + $0xd8] sm:$0xff]
    %v1240 = vld [vmem:[%s1211 + $0xe0] sm:$0xff]
    %v1241 = vld [vmem:[%s1211 + $0xe8] sm:$0xff]
    %v1242 = vld [vmem:[%s1211 + $0xf0] sm:$0xff]
    %v1243 = vld [vmem:[%s1211 + $0xf8] sm:$0xff]
    %1244 = vmatpush.msra.mxu0 %v1242
    %1245 = vmatpush.msra.mxu0 %v1240
    %1246 = vmatpush.msra.mxu0 %v1238
    %1247 = vmatpush.msra.mxu0 %v1236
    %1248 = vmatpush.msra.mxu0 %v1234
    %1249 = vmatpush.msra.mxu0 %v1232
    %1250 = vmatpush.msra.mxu0 %v1230
    %1251 = vmatpush.msra.mxu0 %v1228
    %1252 = vmatpush.msra.mxu0 %v1226
    %1253 = vmatpush.msra.mxu0 %v1224
    %1254 = vmatpush.msra.mxu0 %v1222
    %1255 = vmatpush.msra.mxu0 %v1220
    %1256 = vmatpush.msra.mxu0 %v1218
    %1257 = vmatpush.msra.mxu0 %v1216
    %1258 = vmatpush.msra.mxu0 %v1214
    %1259 = vmatpush.msra.mxu0 %v1212
    %1260 = vmatmul.f32.gmra.mxu0 %v1207
    %v1261 = vpop.f32.mrf.mxu0
    %v1262 = vadd.f32 0.0, %v1261
    %1263 = vmatmul.f32.gmra.mxu0 %v1208
    %v1264 = vpop.f32.mrf.mxu0
    %v1265 = vadd.f32 0.0, %v1264
    %1266 = vmatmul.f32.gmra.mxu0 %v1209
    %v1267 = vpop.f32.mrf.mxu0
    %v1268 = vadd.f32 0.0, %v1267
    %1269 = vmatmul.f32.gmra.mxu0 %v1210
    %v1270 = vpop.f32.mrf.mxu0
    %v1271 = vadd.f32 0.0, %v1270
    %1272 = vdwg.mxu0
    %1273 = vmatpush.msra.mxu0 %v1243
    %1274 = vmatpush.msra.mxu0 %v1241
    %1275 = vmatpush.msra.mxu0 %v1239
    %1276 = vmatpush.msra.mxu0 %v1237
    %1277 = vmatpush.msra.mxu0 %v1235
    %1278 = vmatpush.msra.mxu0 %v1233
    %1279 = vmatpush.msra.mxu0 %v1231
    %1280 = vmatpush.msra.mxu0 %v1229
    %1281 = vmatpush.msra.mxu0 %v1227
    %1282 = vmatpush.msra.mxu0 %v1225
    %1283 = vmatpush.msra.mxu0 %v1223
    %1284 = vmatpush.msra.mxu0 %v1221
    %1285 = vmatpush.msra.mxu0 %v1219
    %1286 = vmatpush.msra.mxu0 %v1217
    %1287 = vmatpush.msra.mxu0 %v1215
    %1288 = vmatpush.msra.mxu0 %v1213
    %1289 = vmatmul.f32.gmra.mxu0 %v1207
    %v1290 = vpop.f32.mrf.mxu0
    %v1291 = vadd.f32 0.0, %v1290
    %1292 = vmatmul.f32.gmra.mxu0 %v1208
    %v1293 = vpop.f32.mrf.mxu0
    %v1294 = vadd.f32 0.0, %v1293
    %1295 = vmatmul.f32.gmra.mxu0 %v1209
    %v1296 = vpop.f32.mrf.mxu0
    %v1297 = vadd.f32 0.0, %v1296
    %1298 = vmatmul.f32.gmra.mxu0 %v1210
    %v1299 = vpop.f32.mrf.mxu0
    %v1300 = vadd.f32 0.0, %v1299
    %1301 = vdwg.mxu0
    %1302 = vmatpush.msra.mxu0 %v1205
    %1303 = vmatpush.msra.mxu0 %v1203
    %1304 = vmatpush.msra.mxu0 %v1201
    %1305 = vmatpush.msra.mxu0 %v1199
    %1306 = vmatpush.msra.mxu0 %v1197
    %1307 = vmatpush.msra.mxu0 %v1195
    %1308 = vmatpush.msra.mxu0 %v1193
    %1309 = vmatpush.msra.mxu0 %v1191
    %1310 = vmatpush.msra.mxu0 %v1189
    %1311 = vmatpush.msra.mxu0 %v1187
    %1312 = vmatpush.msra.mxu0 %v1185
    %1313 = vmatpush.msra.mxu0 %v1183
    %1314 = vmatpush.msra.mxu0 %v1181
    %1315 = vmatpush.msra.mxu0 %v1179
    %1316 = vmatpush.msra.mxu0 %v1177
    %1317 = vmatpush.msra.mxu0 %v1175
    %1318 = vmatmul.f32.gmra.mxu0 %v1171
    %v1319 = vpop.f32.mrf.mxu0
    %v1320 = vadd.f32 %v1262, %v1319
    %1321 = vmatmul.f32.gmra.mxu0 %v1172
    %v1322 = vpop.f32.mrf.mxu0
    %v1323 = vadd.f32 %v1265, %v1322
    %1324 = vmatmul.f32.gmra.mxu0 %v1173
    %v1325 = vpop.f32.mrf.mxu0
    %v1326 = vadd.f32 %v1268, %v1325
    %1327 = vmatmul.f32.gmra.mxu0 %v1174
    %v1328 = vpop.f32.mrf.mxu0
    %v1329 = vadd.f32 %v1271, %v1328
    %1330 = vdwg.mxu0
    %1331 = vmatpush.msra.mxu0 %v1206
    %1332 = vmatpush.msra.mxu0 %v1204
    %1333 = vmatpush.msra.mxu0 %v1202
    %1334 = vmatpush.msra.mxu0 %v1200
    %1335 = vmatpush.msra.mxu0 %v1198
    %1336 = vmatpush.msra.mxu0 %v1196
    %1337 = vmatpush.msra.mxu0 %v1194
    %1338 = vmatpush.msra.mxu0 %v1192
    %1339 = vmatpush.msra.mxu0 %v1190
    %1340 = vmatpush.msra.mxu0 %v1188
    %1341 = vmatpush.msra.mxu0 %v1186
    %1342 = vmatpush.msra.mxu0 %v1184
    %1343 = vmatpush.msra.mxu0 %v1182
    %1344 = vmatpush.msra.mxu0 %v1180
    %1345 = vmatpush.msra.mxu0 %v1178
    %1346 = vmatpush.msra.mxu0 %v1176
    %1347 = vmatmul.f32.gmra.mxu0 %v1171
    %v1348 = vpop.f32.mrf.mxu0
    %v1349 = vadd.f32 %v1291, %v1348
    %1350 = vmatmul.f32.gmra.mxu0 %v1172
    %v1351 = vpop.f32.mrf.mxu0
    %v1352 = vadd.f32 %v1294, %v1351
    %1353 = vmatmul.f32.gmra.mxu0 %v1173
    %v1354 = vpop.f32.mrf.mxu0
    %v1355 = vadd.f32 %v1297, %v1354
    %1356 = vmatmul.f32.gmra.mxu0 %v1174
    %v1357 = vpop.f32.mrf.mxu0
    %v1358 = vadd.f32 %v1300, %v1357
    %1359 = vdwg.mxu0
    %v1360 = vld [vmem:[#allocation3 + $0x2] sm:$0xff]
    %v1361 = vld [vmem:[#allocation3 + $0xa] sm:$0xff]
    %v1362 = vld [vmem:[#allocation3 + $0x1a] sm:$0xff]
    %v1363 = vld [vmem:[#allocation3 + $0x22] sm:$0xff]
    %s1364 = scalar_lea.vmem [#allocation10], 512
    %v1365 = vld [vmem:[%s1364] sm:$0xff]
    %v1366 = vld [vmem:[%s1364 + $0x8] sm:$0xff]
    %v1367 = vld [vmem:[%s1364 + $0x10] sm:$0xff]
    %v1368 = vld [vmem:[%s1364 + $0x18] sm:$0xff]
    %v1369 = vld [vmem:[%s1364 + $0x20] sm:$0xff]
    %v1370 = vld [vmem:[%s1364 + $0x28] sm:$0xff]
    %v1371 = vld [vmem:[%s1364 + $0x30] sm:$0xff]
    %v1372 = vld [vmem:[%s1364 + $0x38] sm:$0xff]
    %v1373 = vld [vmem:[%s1364 + $0x40] sm:$0xff]
    %v1374 = vld [vmem:[%s1364 + $0x48] sm:$0xff]
    %v1375 = vld [vmem:[%s1364 + $0x50] sm:$0xff]
    %v1376 = vld [vmem:[%s1364 + $0x58] sm:$0xff]
    %v1377 = vld [vmem:[%s1364 + $0x60] sm:$0xff]
    %v1378 = vld [vmem:[%s1364 + $0x68] sm:$0xff]
    %v1379 = vld [vmem:[%s1364 + $0x70] sm:$0xff]
    %v1380 = vld [vmem:[%s1364 + $0x78] sm:$0xff]
    %v1381 = vld [vmem:[%s1364 + $0x80] sm:$0xff]
    %v1382 = vld [vmem:[%s1364 + $0x88] sm:$0xff]
    %v1383 = vld [vmem:[%s1364 + $0x90] sm:$0xff]
    %v1384 = vld [vmem:[%s1364 + $0x98] sm:$0xff]
    %v1385 = vld [vmem:[%s1364 + $0xa0] sm:$0xff]
    %v1386 = vld [vmem:[%s1364 + $0xa8] sm:$0xff]
    %v1387 = vld [vmem:[%s1364 + $0xb0] sm:$0xff]
    %v1388 = vld [vmem:[%s1364 + $0xb8] sm:$0xff]
    %v1389 = vld [vmem:[%s1364 + $0xc0] sm:$0xff]
    %v1390 = vld [vmem:[%s1364 + $0xc8] sm:$0xff]
    %v1391 = vld [vmem:[%s1364 + $0xd0] sm:$0xff]
    %v1392 = vld [vmem:[%s1364 + $0xd8] sm:$0xff]
    %v1393 = vld [vmem:[%s1364 + $0xe0] sm:$0xff]
    %v1394 = vld [vmem:[%s1364 + $0xe8] sm:$0xff]
    %v1395 = vld [vmem:[%s1364 + $0xf0] sm:$0xff]
    %v1396 = vld [vmem:[%s1364 + $0xf8] sm:$0xff]
    %1397 = vmatpush.msra.mxu0 %v1395
    %1398 = vmatpush.msra.mxu0 %v1393
    %1399 = vmatpush.msra.mxu0 %v1391
    %1400 = vmatpush.msra.mxu0 %v1389
    %1401 = vmatpush.msra.mxu0 %v1387
    %1402 = vmatpush.msra.mxu0 %v1385
    %1403 = vmatpush.msra.mxu0 %v1383
    %1404 = vmatpush.msra.mxu0 %v1381
    %1405 = vmatpush.msra.mxu0 %v1379
    %1406 = vmatpush.msra.mxu0 %v1377
    %1407 = vmatpush.msra.mxu0 %v1375
    %1408 = vmatpush.msra.mxu0 %v1373
    %1409 = vmatpush.msra.mxu0 %v1371
    %1410 = vmatpush.msra.mxu0 %v1369
    %1411 = vmatpush.msra.mxu0 %v1367
    %1412 = vmatpush.msra.mxu0 %v1365
    %1413 = vmatmul.f32.gmra.mxu0 %v1360
    %v1414 = vpop.f32.mrf.mxu0
    %v1415 = vadd.f32 0.0, %v1414
    %1416 = vmatmul.f32.gmra.mxu0 %v1361
    %v1417 = vpop.f32.mrf.mxu0
    %v1418 = vadd.f32 0.0, %v1417
    %1419 = vmatmul.f32.gmra.mxu0 %v1362
    %v1420 = vpop.f32.mrf.mxu0
    %v1421 = vadd.f32 0.0, %v1420
    %1422 = vmatmul.f32.gmra.mxu0 %v1363
    %v1423 = vpop.f32.mrf.mxu0
    %v1424 = vadd.f32 0.0, %v1423
    %1425 = vdwg.mxu0
    %1426 = vmatpush.msra.mxu0 %v1396
    %1427 = vmatpush.msra.mxu0 %v1394
    %1428 = vmatpush.msra.mxu0 %v1392
    %1429 = vmatpush.msra.mxu0 %v1390
    %1430 = vmatpush.msra.mxu0 %v1388
    %1431 = vmatpush.msra.mxu0 %v1386
    %1432 = vmatpush.msra.mxu0 %v1384
    %1433 = vmatpush.msra.mxu0 %v1382
    %1434 = vmatpush.msra.mxu0 %v1380
    %1435 = vmatpush.msra.mxu0 %v1378
    %1436 = vmatpush.msra.mxu0 %v1376
    %1437 = vmatpush.msra.mxu0 %v1374
    %1438 = vmatpush.msra.mxu0 %v1372
    %1439 = vmatpush.msra.mxu0 %v1370
    %1440 = vmatpush.msra.mxu0 %v1368
    %1441 = vmatpush.msra.mxu0 %v1366
    %1442 = vmatmul.f32.gmra.mxu0 %v1360
    %v1443 = vpop.f32.mrf.mxu0
    %v1444 = vadd.f32 0.0, %v1443
    %1445 = vmatmul.f32.gmra.mxu0 %v1361
    %v1446 = vpop.f32.mrf.mxu0
    %v1447 = vadd.f32 0.0, %v1446
    %1448 = vmatmul.f32.gmra.mxu0 %v1362
    %v1449 = vpop.f32.mrf.mxu0
    %v1450 = vadd.f32 0.0, %v1449
    %1451 = vmatmul.f32.gmra.mxu0 %v1363
    %v1452 = vpop.f32.mrf.mxu0
    %v1453 = vadd.f32 0.0, %v1452
    %1454 = vdwg.mxu0
    %v1455 = vadd.f32 %v1320, %v1415
    %v1456 = vadd.f32 %v1349, %v1444
    %v1457 = vadd.f32 %v1323, %v1418
    %v1458 = vadd.f32 %v1352, %v1447
    %v1459 = vadd.f32 %v1326, %v1421
    %v1460 = vadd.f32 %v1355, %v1450
    %v1461 = vadd.f32 %v1329, %v1424
    %v1462 = vadd.f32 %v1358, %v1453
    %v1463 = vld [vmem:[#allocation3 + $0x3] sm:$0xff]
    %v1464 = vld [vmem:[#allocation3 + $0xb] sm:$0xff]
    %v1465 = vld [vmem:[#allocation3 + $0x1b] sm:$0xff]
    %v1466 = vld [vmem:[#allocation3 + $0x23] sm:$0xff]
    %s1467 = scalar_lea.vmem [#allocation10], 768
    %v1468 = vld [vmem:[%s1467] sm:$0xff]
    %v1469 = vld [vmem:[%s1467 + $0x8] sm:$0xff]
    %v1470 = vld [vmem:[%s1467 + $0x10] sm:$0xff]
    %v1471 = vld [vmem:[%s1467 + $0x18] sm:$0xff]
    %v1472 = vld [vmem:[%s1467 + $0x20] sm:$0xff]
    %v1473 = vld [vmem:[%s1467 + $0x28] sm:$0xff]
    %v1474 = vld [vmem:[%s1467 + $0x30] sm:$0xff]
    %v1475 = vld [vmem:[%s1467 + $0x38] sm:$0xff]
    %v1476 = vld [vmem:[%s1467 + $0x40] sm:$0xff]
    %v1477 = vld [vmem:[%s1467 + $0x48] sm:$0xff]
    %v1478 = vld [vmem:[%s1467 + $0x50] sm:$0xff]
    %v1479 = vld [vmem:[%s1467 + $0x58] sm:$0xff]
    %v1480 = vld [vmem:[%s1467 + $0x60] sm:$0xff]
    %v1481 = vld [vmem:[%s1467 + $0x68] sm:$0xff]
    %v1482 = vld [vmem:[%s1467 + $0x70] sm:$0xff]
    %v1483 = vld [vmem:[%s1467 + $0x78] sm:$0xff]
    %v1484 = vld [vmem:[%s1467 + $0x80] sm:$0xff]
    %v1485 = vld [vmem:[%s1467 + $0x88] sm:$0xff]
    %v1486 = vld [vmem:[%s1467 + $0x90] sm:$0xff]
    %v1487 = vld [vmem:[%s1467 + $0x98] sm:$0xff]
    %v1488 = vld [vmem:[%s1467 + $0xa0] sm:$0xff]
    %v1489 = vld [vmem:[%s1467 + $0xa8] sm:$0xff]
    %v1490 = vld [vmem:[%s1467 + $0xb0] sm:$0xff]
    %v1491 = vld [vmem:[%s1467 + $0xb8] sm:$0xff]
    %v1492 = vld [vmem:[%s1467 + $0xc0] sm:$0xff]
    %v1493 = vld [vmem:[%s1467 + $0xc8] sm:$0xff]
    %v1494 = vld [vmem:[%s1467 + $0xd0] sm:$0xff]
    %v1495 = vld [vmem:[%s1467 + $0xd8] sm:$0xff]
    %v1496 = vld [vmem:[%s1467 + $0xe0] sm:$0xff]
    %v1497 = vld [vmem:[%s1467 + $0xe8] sm:$0xff]
    %v1498 = vld [vmem:[%s1467 + $0xf0] sm:$0xff]
    %v1499 = vld [vmem:[%s1467 + $0xf8] sm:$0xff]
    %1500 = vmatpush.msra.mxu0 %v1498
    %1501 = vmatpush.msra.mxu0 %v1496
    %1502 = vmatpush.msra.mxu0 %v1494
    %1503 = vmatpush.msra.mxu0 %v1492
    %1504 = vmatpush.msra.mxu0 %v1490
    %1505 = vmatpush.msra.mxu0 %v1488
    %1506 = vmatpush.msra.mxu0 %v1486
    %1507 = vmatpush.msra.mxu0 %v1484
    %1508 = vmatpush.msra.mxu0 %v1482
    %1509 = vmatpush.msra.mxu0 %v1480
    %1510 = vmatpush.msra.mxu0 %v1478
    %1511 = vmatpush.msra.mxu0 %v1476
    %1512 = vmatpush.msra.mxu0 %v1474
    %1513 = vmatpush.msra.mxu0 %v1472
    %1514 = vmatpush.msra.mxu0 %v1470
    %1515 = vmatpush.msra.mxu0 %v1468
    %1516 = vmatmul.f32.gmra.mxu0 %v1463
    %v1517 = vpop.f32.mrf.mxu0
    %v1518 = vadd.f32 0.0, %v1517
    %1519 = vmatmul.f32.gmra.mxu0 %v1464
    %v1520 = vpop.f32.mrf.mxu0
    %v1521 = vadd.f32 0.0, %v1520
    %1522 = vmatmul.f32.gmra.mxu0 %v1465
    %v1523 = vpop.f32.mrf.mxu0
    %v1524 = vadd.f32 0.0, %v1523
    %1525 = vmatmul.f32.gmra.mxu0 %v1466
    %v1526 = vpop.f32.mrf.mxu0
    %v1527 = vadd.f32 0.0, %v1526
    %1528 = vdwg.mxu0
    %1529 = vmatpush.msra.mxu0 %v1499
    %1530 = vmatpush.msra.mxu0 %v1497
    %1531 = vmatpush.msra.mxu0 %v1495
    %1532 = vmatpush.msra.mxu0 %v1493
    %1533 = vmatpush.msra.mxu0 %v1491
    %1534 = vmatpush.msra.mxu0 %v1489
    %1535 = vmatpush.msra.mxu0 %v1487
    %1536 = vmatpush.msra.mxu0 %v1485
    %1537 = vmatpush.msra.mxu0 %v1483
    %1538 = vmatpush.msra.mxu0 %v1481
    %1539 = vmatpush.msra.mxu0 %v1479
    %1540 = vmatpush.msra.mxu0 %v1477
    %1541 = vmatpush.msra.mxu0 %v1475
    %1542 = vmatpush.msra.mxu0 %v1473
    %1543 = vmatpush.msra.mxu0 %v1471
    %1544 = vmatpush.msra.mxu0 %v1469
    %1545 = vmatmul.f32.gmra.mxu0 %v1463
    %v1546 = vpop.f32.mrf.mxu0
    %v1547 = vadd.f32 0.0, %v1546
    %1548 = vmatmul.f32.gmra.mxu0 %v1464
    %v1549 = vpop.f32.mrf.mxu0
    %v1550 = vadd.f32 0.0, %v1549
    %1551 = vmatmul.f32.gmra.mxu0 %v1465
    %v1552 = vpop.f32.mrf.mxu0
    %v1553 = vadd.f32 0.0, %v1552
    %1554 = vmatmul.f32.gmra.mxu0 %v1466
    %v1555 = vpop.f32.mrf.mxu0
    %v1556 = vadd.f32 0.0, %v1555
    %1557 = vdwg.mxu0
    %v1558 = vadd.f32 %v1455, %v1518
    %v1559 = vadd.f32 %v1456, %v1547
    %v1560 = vadd.f32 %v1457, %v1521
    %v1561 = vadd.f32 %v1458, %v1550
    %v1562 = vadd.f32 %v1459, %v1524
    %v1563 = vadd.f32 %v1460, %v1553
    %v1564 = vadd.f32 %v1461, %v1527
    %v1565 = vadd.f32 %v1462, %v1556
    %v1566 = vld [vmem:[#allocation3 + $0x4] sm:$0xff]
    %v1567 = vld [vmem:[#allocation3 + $0xc] sm:$0xff]
    %v1568 = vld [vmem:[#allocation3 + $0x1c] sm:$0xff]
    %v1569 = vld [vmem:[#allocation3 + $0x24] sm:$0xff]
    %s1570 = scalar_lea.vmem [#allocation10], 1024
    %v1571 = vld [vmem:[%s1570] sm:$0xff]
    %v1572 = vld [vmem:[%s1570 + $0x8] sm:$0xff]
    %v1573 = vld [vmem:[%s1570 + $0x10] sm:$0xff]
    %v1574 = vld [vmem:[%s1570 + $0x18] sm:$0xff]
    %v1575 = vld [vmem:[%s1570 + $0x20] sm:$0xff]
    %v1576 = vld [vmem:[%s1570 + $0x28] sm:$0xff]
    %v1577 = vld [vmem:[%s1570 + $0x30] sm:$0xff]
    %v1578 = vld [vmem:[%s1570 + $0x38] sm:$0xff]
    %v1579 = vld [vmem:[%s1570 + $0x40] sm:$0xff]
    %v1580 = vld [vmem:[%s1570 + $0x48] sm:$0xff]
    %v1581 = vld [vmem:[%s1570 + $0x50] sm:$0xff]
    %v1582 = vld [vmem:[%s1570 + $0x58] sm:$0xff]
    %v1583 = vld [vmem:[%s1570 + $0x60] sm:$0xff]
    %v1584 = vld [vmem:[%s1570 + $0x68] sm:$0xff]
    %v1585 = vld [vmem:[%s1570 + $0x70] sm:$0xff]
    %v1586 = vld [vmem:[%s1570 + $0x78] sm:$0xff]
    %v1587 = vld [vmem:[%s1570 + $0x80] sm:$0xff]
    %v1588 = vld [vmem:[%s1570 + $0x88] sm:$0xff]
    %v1589 = vld [vmem:[%s1570 + $0x90] sm:$0xff]
    %v1590 = vld [vmem:[%s1570 + $0x98] sm:$0xff]
    %v1591 = vld [vmem:[%s1570 + $0xa0] sm:$0xff]
    %v1592 = vld [vmem:[%s1570 + $0xa8] sm:$0xff]
    %v1593 = vld [vmem:[%s1570 + $0xb0] sm:$0xff]
    %v1594 = vld [vmem:[%s1570 + $0xb8] sm:$0xff]
    %v1595 = vld [vmem:[%s1570 + $0xc0] sm:$0xff]
    %v1596 = vld [vmem:[%s1570 + $0xc8] sm:$0xff]
    %v1597 = vld [vmem:[%s1570 + $0xd0] sm:$0xff]
    %v1598 = vld [vmem:[%s1570 + $0xd8] sm:$0xff]
    %v1599 = vld [vmem:[%s1570 + $0xe0] sm:$0xff]
    %v1600 = vld [vmem:[%s1570 + $0xe8] sm:$0xff]
    %v1601 = vld [vmem:[%s1570 + $0xf0] sm:$0xff]
    %v1602 = vld [vmem:[%s1570 + $0xf8] sm:$0xff]
    %1603 = vmatpush.msra.mxu0 %v1601
    %1604 = vmatpush.msra.mxu0 %v1599
    %1605 = vmatpush.msra.mxu0 %v1597
    %1606 = vmatpush.msra.mxu0 %v1595
    %1607 = vmatpush.msra.mxu0 %v1593
    %1608 = vmatpush.msra.mxu0 %v1591
    %1609 = vmatpush.msra.mxu0 %v1589
    %1610 = vmatpush.msra.mxu0 %v1587
    %1611 = vmatpush.msra.mxu0 %v1585
    %1612 = vmatpush.msra.mxu0 %v1583
    %1613 = vmatpush.msra.mxu0 %v1581
    %1614 = vmatpush.msra.mxu0 %v1579
    %1615 = vmatpush.msra.mxu0 %v1577
    %1616 = vmatpush.msra.mxu0 %v1575
    %1617 = vmatpush.msra.mxu0 %v1573
    %1618 = vmatpush.msra.mxu0 %v1571
    %1619 = vmatmul.f32.gmra.mxu0 %v1566
    %v1620 = vpop.f32.mrf.mxu0
    %v1621 = vadd.f32 0.0, %v1620
    %1622 = vmatmul.f32.gmra.mxu0 %v1567
    %v1623 = vpop.f32.mrf.mxu0
    %v1624 = vadd.f32 0.0, %v1623
    %1625 = vmatmul.f32.gmra.mxu0 %v1568
    %v1626 = vpop.f32.mrf.mxu0
    %v1627 = vadd.f32 0.0, %v1626
    %1628 = vmatmul.f32.gmra.mxu0 %v1569
    %v1629 = vpop.f32.mrf.mxu0
    %v1630 = vadd.f32 0.0, %v1629
    %1631 = vdwg.mxu0
    %1632 = vmatpush.msra.mxu0 %v1602
    %1633 = vmatpush.msra.mxu0 %v1600
    %1634 = vmatpush.msra.mxu0 %v1598
    %1635 = vmatpush.msra.mxu0 %v1596
    %1636 = vmatpush.msra.mxu0 %v1594
    %1637 = vmatpush.msra.mxu0 %v1592
    %1638 = vmatpush.msra.mxu0 %v1590
    %1639 = vmatpush.msra.mxu0 %v1588
    %1640 = vmatpush.msra.mxu0 %v1586
    %1641 = vmatpush.msra.mxu0 %v1584
    %1642 = vmatpush.msra.mxu0 %v1582
    %1643 = vmatpush.msra.mxu0 %v1580
    %1644 = vmatpush.msra.mxu0 %v1578
    %1645 = vmatpush.msra.mxu0 %v1576
    %1646 = vmatpush.msra.mxu0 %v1574
    %1647 = vmatpush.msra.mxu0 %v1572
    %1648 = vmatmul.f32.gmra.mxu0 %v1566
    %v1649 = vpop.f32.mrf.mxu0
    %v1650 = vadd.f32 0.0, %v1649
    %1651 = vmatmul.f32.gmra.mxu0 %v1567
    %v1652 = vpop.f32.mrf.mxu0
    %v1653 = vadd.f32 0.0, %v1652
    %1654 = vmatmul.f32.gmra.mxu0 %v1568
    %v1655 = vpop.f32.mrf.mxu0
    %v1656 = vadd.f32 0.0, %v1655
    %1657 = vmatmul.f32.gmra.mxu0 %v1569
    %v1658 = vpop.f32.mrf.mxu0
    %v1659 = vadd.f32 0.0, %v1658
    %1660 = vdwg.mxu0
    %v1661 = vadd.f32 %v1558, %v1621
    %v1662 = vadd.f32 %v1559, %v1650
    %v1663 = vadd.f32 %v1560, %v1624
    %v1664 = vadd.f32 %v1561, %v1653
    %v1665 = vadd.f32 %v1562, %v1627
    %v1666 = vadd.f32 %v1563, %v1656
    %v1667 = vadd.f32 %v1564, %v1630
    %v1668 = vadd.f32 %v1565, %v1659
    %v1669 = vld [vmem:[%s4] sm:$0x3]
    %v1671 = vperm.slane %v1669, 0
    %v1672 = vperm.slane %v1669, 1
    %v1675 = vadd.f32 %v1661, %v1671
    %v1676 = vadd.f32 %v1662, %v1672
    %v1677 = vadd.f32 %v1663, %v1671
    %v1678 = vadd.f32 %v1664, %v1672
    %v1679 = vadd.f32 %v1665, %v1671
    %v1680 = vadd.f32 %v1666, %v1672
    %v1681 = vadd.f32 %v1667, %v1671
    %v1682 = vadd.f32 %v1668, %v1672
    %v1683 = vmax.f32 %v1675, 0.0
    %v1684 = vmax.f32 %v1676, 0.0
    %v1685 = vmax.f32 %v1677, 0.0
    %v1686 = vmax.f32 %v1678, 0.0
    %v1687 = vmax.f32 %v1679, 0.0
    %v1688 = vmax.f32 %v1680, 0.0
    %v1689 = vmax.f32 %v1681, 0.0
    %v1690 = vmax.f32 %v1682, 0.0
    %v1691 = vmax.f32 %v1683, %v1684
    %v1692 = vmax.f32 %v1685, %v1686
    %v1693 = vmax.f32 %v1687, %v1688
    %v1694 = vmax.f32 %v1689, %v1690
    %v1699 = vrot.slane %v1691, 2
    %v1700 = vrot.slane %v1691, 4
    %v1701 = vrot.slane %v1691, 6
    %v1702 = vrot.slane %v1692, 2
    %v1703 = vrot.slane %v1692, 4
    %v1704 = vrot.slane %v1692, 6
    %v1705 = vrot.slane %v1693, 2
    %v1706 = vrot.slane %v1693, 4
    %v1707 = vrot.slane %v1693, 6
    %v1708 = vrot.slane %v1694, 2
    %v1709 = vrot.slane %v1694, 4
    %v1710 = vrot.slane %v1694, 6
    %v1723 = vrot.slane %v1691, 7
    %v1724 = vrot.slane %v1723, 2
    %v1725 = vrot.slane %v1699, 7
    %v1726 = vrot.slane %v1725, 2
    %v1727 = vrot.slane %v1700, 7
    %v1728 = vrot.slane %v1727, 2
    %v1729 = vrot.slane %v1701, 7
    %v1730 = vrot.slane %v1729, 2
    %v1731 = vrot.slane %v1692, 7
    %v1732 = vrot.slane %v1731, 2
    %v1733 = vrot.slane %v1702, 7
    %v1734 = vrot.slane %v1733, 2
    %v1735 = vrot.slane %v1703, 7
    %v1736 = vrot.slane %v1735, 2
    %v1737 = vrot.slane %v1704, 7
    %v1738 = vrot.slane %v1737, 2
    %v1739 = vrot.slane %v1693, 7
    %v1740 = vrot.slane %v1739, 2
    %v1741 = vrot.slane %v1705, 7
    %v1742 = vrot.slane %v1741, 2
    %v1743 = vrot.slane %v1706, 7
    %v1744 = vrot.slane %v1743, 2
    %v1745 = vrot.slane %v1707, 7
    %v1746 = vrot.slane %v1745, 2
    %v1747 = vrot.slane %v1694, 7
    %v1748 = vrot.slane %v1747, 2
    %v1749 = vrot.slane %v1708, 7
    %v1750 = vrot.slane %v1749, 2
    %v1751 = vrot.slane %v1709, 7
    %v1752 = vrot.slane %v1751, 2
    %v1753 = vrot.slane %v1710, 7
    %v1754 = vrot.slane %v1753, 2
    %v1771 = vmax.f32 %v1691, %v1724
    %v1772 = vmax.f32 %v1699, %v1726
    %v1773 = vmax.f32 %v1700, %v1728
    %v1774 = vmax.f32 %v1701, %v1730
    %v1775 = vmax.f32 %v1692, %v1732
    %v1776 = vmax.f32 %v1702, %v1734
    %v1777 = vmax.f32 %v1703, %v1736
    %v1778 = vmax.f32 %v1704, %v1738
    %v1779 = vmax.f32 %v1693, %v1740
    %v1780 = vmax.f32 %v1705, %v1742
    %v1781 = vmax.f32 %v1706, %v1744
    %v1782 = vmax.f32 %v1707, %v1746
    %v1783 = vmax.f32 %v1694, %v1748
    %v1784 = vmax.f32 %v1708, %v1750
    %v1785 = vmax.f32 %v1709, %v1752
    %v1786 = vmax.f32 %v1710, %v1754
    %v1787 = vld [vmem:[#allocation12] sm:$0xff]
    %v1788 = vld [vmem:[#allocation12 + $0x8] sm:$0xff]
    %v1789 = vld [vmem:[#allocation12 + $0x10] sm:$0xff]
    %v1790 = vld [vmem:[#allocation12 + $0x18] sm:$0xff]
    %v1791 = vld [vmem:[#allocation12 + $0x20] sm:$0xff]
    %v1792 = vld [vmem:[#allocation12 + $0x28] sm:$0xff]
    %v1793 = vld [vmem:[#allocation12 + $0x30] sm:$0xff]
    %v1794 = vld [vmem:[#allocation12 + $0x38] sm:$0xff]
    %v1795 = vld [vmem:[#allocation12 + $0x40] sm:$0xff]
    %v1796 = vld [vmem:[#allocation12 + $0x48] sm:$0xff]
    %v1797 = vld [vmem:[#allocation12 + $0x50] sm:$0xff]
    %v1798 = vld [vmem:[#allocation12 + $0x58] sm:$0xff]
    %v1799 = vld [vmem:[#allocation12 + $0x60] sm:$0xff]
    %v1800 = vld [vmem:[#allocation12 + $0x68] sm:$0xff]
    %v1801 = vld [vmem:[#allocation12 + $0x70] sm:$0xff]
    %v1802 = vld [vmem:[#allocation12 + $0x78] sm:$0xff]
    %s1803 = scalar_lea.vmem [#allocation12], 128
    %v1804 = vld [vmem:[%s1803] sm:$0xff]
    %v1805 = vld [vmem:[%s1803 + $0x8] sm:$0xff]
    %v1806 = vld [vmem:[%s1803 + $0x10] sm:$0xff]
    %v1807 = vld [vmem:[%s1803 + $0x18] sm:$0xff]
    %v1808 = vld [vmem:[%s1803 + $0x20] sm:$0xff]
    %v1809 = vld [vmem:[%s1803 + $0x28] sm:$0xff]
    %v1810 = vld [vmem:[%s1803 + $0x30] sm:$0xff]
    %v1811 = vld [vmem:[%s1803 + $0x38] sm:$0xff]
    %v1812 = vld [vmem:[%s1803 + $0x40] sm:$0xff]
    %v1813 = vld [vmem:[%s1803 + $0x48] sm:$0xff]
    %v1814 = vld [vmem:[%s1803 + $0x50] sm:$0xff]
    %v1815 = vld [vmem:[%s1803 + $0x58] sm:$0xff]
    %v1816 = vld [vmem:[%s1803 + $0x60] sm:$0xff]
    %v1817 = vld [vmem:[%s1803 + $0x68] sm:$0xff]
    %v1818 = vld [vmem:[%s1803 + $0x70] sm:$0xff]
    %v1819 = vld [vmem:[%s1803 + $0x78] sm:$0xff]
    %v1822 = vperm.slane %v1772, 0
    %v1823 = vperm.slane %v1780, 0
    %v1824 = vsel %vm1128, %v1823, %v1822
    %1826 = vmatpush.msra.mxu0 %v1819
    %1827 = vmatpush.msra.mxu0 %v1818
    %1828 = vmatpush.msra.mxu0 %v1817
    %1829 = vmatpush.msra.mxu0 %v1816
    %1830 = vmatpush.msra.mxu0 %v1815
    %1831 = vmatpush.msra.mxu0 %v1814
    %1832 = vmatpush.msra.mxu0 %v1813
    %1833 = vmatpush.msra.mxu0 %v1812
    %1834 = vmatpush.msra.mxu0 %v1811
    %1835 = vmatpush.msra.mxu0 %v1810
    %1836 = vmatpush.msra.mxu0 %v1809
    %1837 = vmatpush.msra.mxu0 %v1808
    %1838 = vmatpush.msra.mxu0 %v1807
    %1839 = vmatpush.msra.mxu0 %v1806
    %1840 = vmatpush.msra.mxu0 %v1805
    %1841 = vmatpush.msra.mxu0 %v1804
    %1842 = vmatmul.f32.gmra.mxu0 %v1824
    %v1843 = vpop.f32.mrf.mxu0
    %v1844 = vadd.f32 0.0, %v1843
    %1845 = vdwg.mxu0
    %v1848 = vperm.slane %v1771, 0
    %v1849 = vperm.slane %v1779, 0
    %v1850 = vsel %vm1128, %v1849, %v1848
    %1852 = vmatpush.msra.mxu0 %v1802
    %1853 = vmatpush.msra.mxu0 %v1801
    %1854 = vmatpush.msra.mxu0 %v1800
    %1855 = vmatpush.msra.mxu0 %v1799
    %1856 = vmatpush.msra.mxu0 %v1798
    %1857 = vmatpush.msra.mxu0 %v1797
    %1858 = vmatpush.msra.mxu0 %v1796
    %1859 = vmatpush.msra.mxu0 %v1795
    %1860 = vmatpush.msra.mxu0 %v1794
    %1861 = vmatpush.msra.mxu0 %v1793
    %1862 = vmatpush.msra.mxu0 %v1792
    %1863 = vmatpush.msra.mxu0 %v1791
    %1864 = vmatpush.msra.mxu0 %v1790
    %1865 = vmatpush.msra.mxu0 %v1789
    %1866 = vmatpush.msra.mxu0 %v1788
    %1867 = vmatpush.msra.mxu0 %v1787
    %1868 = vmatmul.f32.gmra.mxu0 %v1850
    %v1869 = vpop.f32.mrf.mxu0
    %v1870 = vadd.f32 %v1844, %v1869
    %1871 = vdwg.mxu0
    %s1872 = scalar_lea.vmem [#allocation12], 256
    %v1873 = vld [vmem:[%s1872] sm:$0xff]
    %v1874 = vld [vmem:[%s1872 + $0x8] sm:$0xff]
    %v1875 = vld [vmem:[%s1872 + $0x10] sm:$0xff]
    %v1876 = vld [vmem:[%s1872 + $0x18] sm:$0xff]
    %v1877 = vld [vmem:[%s1872 + $0x20] sm:$0xff]
    %v1878 = vld [vmem:[%s1872 + $0x28] sm:$0xff]
    %v1879 = vld [vmem:[%s1872 + $0x30] sm:$0xff]
    %v1880 = vld [vmem:[%s1872 + $0x38] sm:$0xff]
    %v1881 = vld [vmem:[%s1872 + $0x40] sm:$0xff]
    %v1882 = vld [vmem:[%s1872 + $0x48] sm:$0xff]
    %v1883 = vld [vmem:[%s1872 + $0x50] sm:$0xff]
    %v1884 = vld [vmem:[%s1872 + $0x58] sm:$0xff]
    %v1885 = vld [vmem:[%s1872 + $0x60] sm:$0xff]
    %v1886 = vld [vmem:[%s1872 + $0x68] sm:$0xff]
    %v1887 = vld [vmem:[%s1872 + $0x70] sm:$0xff]
    %v1888 = vld [vmem:[%s1872 + $0x78] sm:$0xff]
    %v1891 = vperm.slane %v1773, 0
    %v1892 = vperm.slane %v1781, 0
    %v1893 = vsel %vm1128, %v1892, %v1891
    %1895 = vmatpush.msra.mxu0 %v1888
    %1896 = vmatpush.msra.mxu0 %v1887
    %1897 = vmatpush.msra.mxu0 %v1886
    %1898 = vmatpush.msra.mxu0 %v1885
    %1899 = vmatpush.msra.mxu0 %v1884
    %1900 = vmatpush.msra.mxu0 %v1883
    %1901 = vmatpush.msra.mxu0 %v1882
    %1902 = vmatpush.msra.mxu0 %v1881
    %1903 = vmatpush.msra.mxu0 %v1880
    %1904 = vmatpush.msra.mxu0 %v1879
    %1905 = vmatpush.msra.mxu0 %v1878
    %1906 = vmatpush.msra.mxu0 %v1877
    %1907 = vmatpush.msra.mxu0 %v1876
    %1908 = vmatpush.msra.mxu0 %v1875
    %1909 = vmatpush.msra.mxu0 %v1874
    %1910 = vmatpush.msra.mxu0 %v1873
    %1911 = vmatmul.f32.gmra.mxu0 %v1893
    %v1912 = vpop.f32.mrf.mxu0
    %v1913 = vadd.f32 0.0, %v1912
    %1914 = vdwg.mxu0
    %v1915 = vadd.f32 %v1870, %v1913
    %s1916 = scalar_lea.vmem [#allocation12], 384
    %v1917 = vld [vmem:[%s1916] sm:$0xff]
    %v1918 = vld [vmem:[%s1916 + $0x8] sm:$0xff]
    %v1919 = vld [vmem:[%s1916 + $0x10] sm:$0xff]
    %v1920 = vld [vmem:[%s1916 + $0x18] sm:$0xff]
    %v1921 = vld [vmem:[%s1916 + $0x20] sm:$0xff]
    %v1922 = vld [vmem:[%s1916 + $0x28] sm:$0xff]
    %v1923 = vld [vmem:[%s1916 + $0x30] sm:$0xff]
    %v1924 = vld [vmem:[%s1916 + $0x38] sm:$0xff]
    %v1925 = vld [vmem:[%s1916 + $0x40] sm:$0xff]
    %v1926 = vld [vmem:[%s1916 + $0x48] sm:$0xff]
    %v1927 = vld [vmem:[%s1916 + $0x50] sm:$0xff]
    %v1928 = vld [vmem:[%s1916 + $0x58] sm:$0xff]
    %v1929 = vld [vmem:[%s1916 + $0x60] sm:$0xff]
    %v1930 = vld [vmem:[%s1916 + $0x68] sm:$0xff]
    %v1931 = vld [vmem:[%s1916 + $0x70] sm:$0xff]
    %v1932 = vld [vmem:[%s1916 + $0x78] sm:$0xff]
    %v1935 = vperm.slane %v1774, 0
    %v1936 = vperm.slane %v1782, 0
    %v1937 = vsel %vm1128, %v1936, %v1935
    %1939 = vmatpush.msra.mxu0 %v1932
    %1940 = vmatpush.msra.mxu0 %v1931
    %1941 = vmatpush.msra.mxu0 %v1930
    %1942 = vmatpush.msra.mxu0 %v1929
    %1943 = vmatpush.msra.mxu0 %v1928
    %1944 = vmatpush.msra.mxu0 %v1927
    %1945 = vmatpush.msra.mxu0 %v1926
    %1946 = vmatpush.msra.mxu0 %v1925
    %1947 = vmatpush.msra.mxu0 %v1924
    %1948 = vmatpush.msra.mxu0 %v1923
    %1949 = vmatpush.msra.mxu0 %v1922
    %1950 = vmatpush.msra.mxu0 %v1921
    %1951 = vmatpush.msra.mxu0 %v1920
    %1952 = vmatpush.msra.mxu0 %v1919
    %1953 = vmatpush.msra.mxu0 %v1918
    %1954 = vmatpush.msra.mxu0 %v1917
    %1955 = vmatmul.f32.gmra.mxu0 %v1937
    %v1956 = vpop.f32.mrf.mxu0
    %v1957 = vadd.f32 0.0, %v1956
    %1958 = vdwg.mxu0
    %v1959 = vadd.f32 %v1915, %v1957
    %s1960 = scalar_lea.vmem [#allocation12], 512
    %v1961 = vld [vmem:[%s1960] sm:$0xff]
    %v1962 = vld [vmem:[%s1960 + $0x8] sm:$0xff]
    %v1963 = vld [vmem:[%s1960 + $0x10] sm:$0xff]
    %v1964 = vld [vmem:[%s1960 + $0x18] sm:$0xff]
    %v1965 = vld [vmem:[%s1960 + $0x20] sm:$0xff]
    %v1966 = vld [vmem:[%s1960 + $0x28] sm:$0xff]
    %v1967 = vld [vmem:[%s1960 + $0x30] sm:$0xff]
    %v1968 = vld [vmem:[%s1960 + $0x38] sm:$0xff]
    %v1969 = vld [vmem:[%s1960 + $0x40] sm:$0xff]
    %v1970 = vld [vmem:[%s1960 + $0x48] sm:$0xff]
    %v1971 = vld [vmem:[%s1960 + $0x50] sm:$0xff]
    %v1972 = vld [vmem:[%s1960 + $0x58] sm:$0xff]
    %v1973 = vld [vmem:[%s1960 + $0x60] sm:$0xff]
    %v1974 = vld [vmem:[%s1960 + $0x68] sm:$0xff]
    %v1975 = vld [vmem:[%s1960 + $0x70] sm:$0xff]
    %v1976 = vld [vmem:[%s1960 + $0x78] sm:$0xff]
    %v1979 = vperm.slane %v1775, 0
    %v1980 = vperm.slane %v1783, 0
    %v1981 = vsel %vm1128, %v1980, %v1979
    %1983 = vmatpush.msra.mxu0 %v1976
    %1984 = vmatpush.msra.mxu0 %v1975
    %1985 = vmatpush.msra.mxu0 %v1974
    %1986 = vmatpush.msra.mxu0 %v1973
    %1987 = vmatpush.msra.mxu0 %v1972
    %1988 = vmatpush.msra.mxu0 %v1971
    %1989 = vmatpush.msra.mxu0 %v1970
    %1990 = vmatpush.msra.mxu0 %v1969
    %1991 = vmatpush.msra.mxu0 %v1968
    %1992 = vmatpush.msra.mxu0 %v1967
    %1993 = vmatpush.msra.mxu0 %v1966
    %1994 = vmatpush.msra.mxu0 %v1965
    %1995 = vmatpush.msra.mxu0 %v1964
    %1996 = vmatpush.msra.mxu0 %v1963
    %1997 = vmatpush.msra.mxu0 %v1962
    %1998 = vmatpush.msra.mxu0 %v1961
    %1999 = vmatmul.f32.gmra.mxu0 %v1981
    %v2000 = vpop.f32.mrf.mxu0
    %v2001 = vadd.f32 0.0, %v2000
    %2002 = vdwg.mxu0
    %v2003 = vadd.f32 %v1959, %v2001
    %s2004 = scalar_lea.vmem [#allocation12], 640
    %v2005 = vld [vmem:[%s2004] sm:$0xff]
    %v2006 = vld [vmem:[%s2004 + $0x8] sm:$0xff]
    %v2007 = vld [vmem:[%s2004 + $0x10] sm:$0xff]
    %v2008 = vld [vmem:[%s2004 + $0x18] sm:$0xff]
    %v2009 = vld [vmem:[%s2004 + $0x20] sm:$0xff]
    %v2010 = vld [vmem:[%s2004 + $0x28] sm:$0xff]
    %v2011 = vld [vmem:[%s2004 + $0x30] sm:$0xff]
    %v2012 = vld [vmem:[%s2004 + $0x38] sm:$0xff]
    %v2013 = vld [vmem:[%s2004 + $0x40] sm:$0xff]
    %v2014 = vld [vmem:[%s2004 + $0x48] sm:$0xff]
    %v2015 = vld [vmem:[%s2004 + $0x50] sm:$0xff]
    %v2016 = vld [vmem:[%s2004 + $0x58] sm:$0xff]
    %v2017 = vld [vmem:[%s2004 + $0x60] sm:$0xff]
    %v2018 = vld [vmem:[%s2004 + $0x68] sm:$0xff]
    %v2019 = vld [vmem:[%s2004 + $0x70] sm:$0xff]
    %v2020 = vld [vmem:[%s2004 + $0x78] sm:$0xff]
    %v2023 = vperm.slane %v1776, 0
    %v2024 = vperm.slane %v1784, 0
    %v2025 = vsel %vm1128, %v2024, %v2023
    %2027 = vmatpush.msra.mxu0 %v2020
    %2028 = vmatpush.msra.mxu0 %v2019
    %2029 = vmatpush.msra.mxu0 %v2018
    %2030 = vmatpush.msra.mxu0 %v2017
    %2031 = vmatpush.msra.mxu0 %v2016
    %2032 = vmatpush.msra.mxu0 %v2015
    %2033 = vmatpush.msra.mxu0 %v2014
    %2034 = vmatpush.msra.mxu0 %v2013
    %2035 = vmatpush.msra.mxu0 %v2012
    %2036 = vmatpush.msra.mxu0 %v2011
    %2037 = vmatpush.msra.mxu0 %v2010
    %2038 = vmatpush.msra.mxu0 %v2009
    %2039 = vmatpush.msra.mxu0 %v2008
    %2040 = vmatpush.msra.mxu0 %v2007
    %2041 = vmatpush.msra.mxu0 %v2006
    %2042 = vmatpush.msra.mxu0 %v2005
    %2043 = vmatmul.f32.gmra.mxu0 %v2025
    %v2044 = vpop.f32.mrf.mxu0
    %v2045 = vadd.f32 0.0, %v2044
    %2046 = vdwg.mxu0
    %v2047 = vadd.f32 %v2003, %v2045
    %s2048 = scalar_lea.vmem [#allocation12], 768
    %v2049 = vld [vmem:[%s2048] sm:$0xff]
    %v2050 = vld [vmem:[%s2048 + $0x8] sm:$0xff]
    %v2051 = vld [vmem:[%s2048 + $0x10] sm:$0xff]
    %v2052 = vld [vmem:[%s2048 + $0x18] sm:$0xff]
    %v2053 = vld [vmem:[%s2048 + $0x20] sm:$0xff]
    %v2054 = vld [vmem:[%s2048 + $0x28] sm:$0xff]
    %v2055 = vld [vmem:[%s2048 + $0x30] sm:$0xff]
    %v2056 = vld [vmem:[%s2048 + $0x38] sm:$0xff]
    %v2057 = vld [vmem:[%s2048 + $0x40] sm:$0xff]
    %v2058 = vld [vmem:[%s2048 + $0x48] sm:$0xff]
    %v2059 = vld [vmem:[%s2048 + $0x50] sm:$0xff]
    %v2060 = vld [vmem:[%s2048 + $0x58] sm:$0xff]
    %v2061 = vld [vmem:[%s2048 + $0x60] sm:$0xff]
    %v2062 = vld [vmem:[%s2048 + $0x68] sm:$0xff]
    %v2063 = vld [vmem:[%s2048 + $0x70] sm:$0xff]
    %v2064 = vld [vmem:[%s2048 + $0x78] sm:$0xff]
    %v2067 = vperm.slane %v1777, 0
    %v2068 = vperm.slane %v1785, 0
    %v2069 = vsel %vm1128, %v2068, %v2067
    %2071 = vmatpush.msra.mxu0 %v2064
    %2072 = vmatpush.msra.mxu0 %v2063
    %2073 = vmatpush.msra.mxu0 %v2062
    %2074 = vmatpush.msra.mxu0 %v2061
    %2075 = vmatpush.msra.mxu0 %v2060
    %2076 = vmatpush.msra.mxu0 %v2059
    %2077 = vmatpush.msra.mxu0 %v2058
    %2078 = vmatpush.msra.mxu0 %v2057
    %2079 = vmatpush.msra.mxu0 %v2056
    %2080 = vmatpush.msra.mxu0 %v2055
    %2081 = vmatpush.msra.mxu0 %v2054
    %2082 = vmatpush.msra.mxu0 %v2053
    %2083 = vmatpush.msra.mxu0 %v2052
    %2084 = vmatpush.msra.mxu0 %v2051
    %2085 = vmatpush.msra.mxu0 %v2050
    %2086 = vmatpush.msra.mxu0 %v2049
    %2087 = vmatmul.f32.gmra.mxu0 %v2069
    %v2088 = vpop.f32.mrf.mxu0
    %v2089 = vadd.f32 0.0, %v2088
    %2090 = vdwg.mxu0
    %v2091 = vadd.f32 %v2047, %v2089
    %s2092 = scalar_lea.vmem [#allocation12], 896
    %v2093 = vld [vmem:[%s2092] sm:$0xff]
    %v2094 = vld [vmem:[%s2092 + $0x8] sm:$0xff]
    %v2095 = vld [vmem:[%s2092 + $0x10] sm:$0xff]
    %v2096 = vld [vmem:[%s2092 + $0x18] sm:$0xff]
    %v2097 = vld [vmem:[%s2092 + $0x20] sm:$0xff]
    %v2098 = vld [vmem:[%s2092 + $0x28] sm:$0xff]
    %v2099 = vld [vmem:[%s2092 + $0x30] sm:$0xff]
    %v2100 = vld [vmem:[%s2092 + $0x38] sm:$0xff]
    %v2101 = vld [vmem:[%s2092 + $0x40] sm:$0xff]
    %v2102 = vld [vmem:[%s2092 + $0x48] sm:$0xff]
    %v2103 = vld [vmem:[%s2092 + $0x50] sm:$0xff]
    %v2104 = vld [vmem:[%s2092 + $0x58] sm:$0xff]
    %v2105 = vld [vmem:[%s2092 + $0x60] sm:$0xff]
    %v2106 = vld [vmem:[%s2092 + $0x68] sm:$0xff]
    %v2107 = vld [vmem:[%s2092 + $0x70] sm:$0xff]
    %v2108 = vld [vmem:[%s2092 + $0x78] sm:$0xff]
    %v2111 = vperm.slane %v1778, 0
    %v2112 = vperm.slane %v1786, 0
    %v2113 = vsel %vm1128, %v2112, %v2111
    %2115 = vmatpush.msra.mxu0 %v2108
    %2116 = vmatpush.msra.mxu0 %v2107
    %2117 = vmatpush.msra.mxu0 %v2106
    %2118 = vmatpush.msra.mxu0 %v2105
    %2119 = vmatpush.msra.mxu0 %v2104
    %2120 = vmatpush.msra.mxu0 %v2103
    %2121 = vmatpush.msra.mxu0 %v2102
    %2122 = vmatpush.msra.mxu0 %v2101
    %2123 = vmatpush.msra.mxu0 %v2100
    %2124 = vmatpush.msra.mxu0 %v2099
    %2125 = vmatpush.msra.mxu0 %v2098
    %2126 = vmatpush.msra.mxu0 %v2097
    %2127 = vmatpush.msra.mxu0 %v2096
    %2128 = vmatpush.msra.mxu0 %v2095
    %2129 = vmatpush.msra.mxu0 %v2094
    %2130 = vmatpush.msra.mxu0 %v2093
    %2131 = vmatmul.f32.gmra.mxu0 %v2113
    %v2132 = vpop.f32.mrf.mxu0
    %v2133 = vadd.f32 0.0, %v2132
    %2134 = vdwg.mxu0
    %v2135 = vadd.f32 %v2091, %v2133
    %v2136 = vld [vmem:[%s6] sm:$0x1]
    %v2138 = vperm.slane %v2136, 0
    %v2140 = vadd.f32 %v2135, %v2138
    %v2141 = vmax.f32 %v2140, 0.0
    %v2142 = vld [vmem:[#allocation13] sm:$0xff]
    %v2143 = vld [vmem:[#allocation13 + $0x8] sm:$0xff]
    %v2144 = vld [vmem:[#allocation13 + $0x10] sm:$0xff]
    %v2145 = vld [vmem:[#allocation13 + $0x18] sm:$0xff]
    %v2146 = vld [vmem:[#allocation13 + $0x20] sm:$0xff]
    %v2147 = vld [vmem:[#allocation13 + $0x28] sm:$0xff]
    %v2148 = vld [vmem:[#allocation13 + $0x30] sm:$0xff]
    %v2149 = vld [vmem:[#allocation13 + $0x38] sm:$0xff]
    %v2150 = vld [vmem:[#allocation13 + $0x40] sm:$0xff]
    %v2151 = vld [vmem:[#allocation13 + $0x48] sm:$0xff]
    %v2152 = vld [vmem:[#allocation13 + $0x50] sm:$0xff]
    %v2153 = vld [vmem:[#allocation13 + $0x58] sm:$0xff]
    %v2154 = vld [vmem:[#allocation13 + $0x60] sm:$0xff]
    %v2155 = vld [vmem:[#allocation13 + $0x68] sm:$0xff]
    %v2156 = vld [vmem:[#allocation13 + $0x70] sm:$0xff]
    %v2157 = vld [vmem:[#allocation13 + $0x78] sm:$0xff]
    %v2158 = vld [vmem:[%s8] sm:$0x1]
    %v2160 = vperm.slane %v2158, 0
    %2162 = vmatpush.msra.mxu0 %v2157
    %2163 = vmatpush.msra.mxu0 %v2156
    %2164 = vmatpush.msra.mxu0 %v2155
    %2165 = vmatpush.msra.mxu0 %v2154
    %2166 = vmatpush.msra.mxu0 %v2153
    %2167 = vmatpush.msra.mxu0 %v2152
    %2168 = vmatpush.msra.mxu0 %v2151
    %2169 = vmatpush.msra.mxu0 %v2150
    %2170 = vmatpush.msra.mxu0 %v2149
    %2171 = vmatpush.msra.mxu0 %v2148
    %2172 = vmatpush.msra.mxu0 %v2147
    %2173 = vmatpush.msra.mxu0 %v2146
    %2174 = vmatpush.msra.mxu0 %v2145
    %2175 = vmatpush.msra.mxu0 %v2144
    %2176 = vmatpush.msra.mxu0 %v2143
    %2177 = vmatpush.msra.mxu0 %v2142
    %2178 = vmatmul.f32.gmra.mxu0 %v2141
    %v2179 = vpop.f32.mrf.mxu0
    %v2180 = vadd.f32 %v2160, %v2179
    %2181 = vdwg.mxu0
    %v2182 = vmax.f32 %v2180, 0.0
    %v2183 = vld [vmem:[#allocation15] sm:$0xff]
    %v2184 = vld [vmem:[#allocation15 + $0x8] sm:$0xff]
    %v2185 = vld [vmem:[#allocation15 + $0x10] sm:$0xff]
    %v2186 = vld [vmem:[#allocation15 + $0x18] sm:$0xff]
    %v2187 = vld [vmem:[#allocation15 + $0x20] sm:$0xff]
    %v2188 = vld [vmem:[#allocation15 + $0x28] sm:$0xff]
    %v2189 = vld [vmem:[#allocation15 + $0x30] sm:$0xff]
    %v2190 = vld [vmem:[#allocation15 + $0x38] sm:$0xff]
    %v2191 = vld [vmem:[#allocation15 + $0x40] sm:$0xff]
    %v2192 = vld [vmem:[#allocation15 + $0x48] sm:$0xff]
    %v2193 = vld [vmem:[#allocation15 + $0x50] sm:$0xff]
    %v2194 = vld [vmem:[#allocation15 + $0x58] sm:$0xff]
    %v2195 = vld [vmem:[#allocation15 + $0x60] sm:$0xff]
    %v2196 = vld [vmem:[#allocation15 + $0x68] sm:$0xff]
    %v2197 = vld [vmem:[#allocation15 + $0x70] sm:$0xff]
    %v2198 = vld [vmem:[#allocation15 + $0x78] sm:$0xff]
    %v2199 = vld [vmem:[%s10] sm:$0x1]
    %v2201 = vperm.slane %v2199, 0
    %2203 = vmatpush.msra.mxu0 %v2198
    %2204 = vmatpush.msra.mxu0 %v2197
    %2205 = vmatpush.msra.mxu0 %v2196
    %2206 = vmatpush.msra.mxu0 %v2195
    %2207 = vmatpush.msra.mxu0 %v2194
    %2208 = vmatpush.msra.mxu0 %v2193
    %2209 = vmatpush.msra.mxu0 %v2192
    %2210 = vmatpush.msra.mxu0 %v2191
    %2211 = vmatpush.msra.mxu0 %v2190
    %2212 = vmatpush.msra.mxu0 %v2189
    %2213 = vmatpush.msra.mxu0 %v2188
    %2214 = vmatpush.msra.mxu0 %v2187
    %2215 = vmatpush.msra.mxu0 %v2186
    %2216 = vmatpush.msra.mxu0 %v2185
    %2217 = vmatpush.msra.mxu0 %v2184
    %2218 = vmatpush.msra.mxu0 %v2183
    %2219 = vmatmul.f32.gmra.mxu0 %v2182
    %v2220 = vpop.f32.mrf.mxu0
    %v2221 = vadd.f32 %v2201, %v2220
    %2222 = vdwg.mxu0
    %2223 = vst [vmem:[#allocation16] sm:$0x3] %v2221
    // Predicated region
    $region74: #{net_forward.1} parent=1 // pred_check
      _
    $region75: #{net_forward.1} parent=1 // pred_check_branch
      %2225 = sbr.rel (0) target = $region77
    $region76: #{net_forward.1} parent=1 // pred_region
      %2227 = vsyncadd [#allocation6], 0
      %s2229 = sshll.u32 [#allocation16], 4
      %s2230 = int_to_ptr.vmem [resolvable:$true] %s2229
      %s2231 = sshll.u32 %s11, 4
      %s2232 = int_to_ptr.hbm [resolvable:$true] %s2231
      %2234 = dma.vmem_to_hbm [thread:$0]  %s2230, 32, %s2232, [#allocation6]
    $region77: #{net_forward.1} parent=1 // pred_fallthru
      _
    // Predicated region
    $region78: #{net_forward.1} parent=1 // pred_check
      _
    $region79: #{net_forward.1} parent=1 // pred_check_branch
      %2236 = sbr.rel (0) target = $region81
    $region80: #{net_forward.1} parent=1 // pred_region
      %2238 = dma.done [#allocation6], 32
    $region81: #{net_forward.1} parent=1 // pred_fallthru
      _
    %2239 = vsyncpa [#allocation5], 1
    %2240 = vsyncpa [#allocation8], 1
    %2241 = vsyncpa [#allocation11], 1
    %2242 = vsyncpa [#allocation14], 1
    %2243 = vsyncpa [#allocation6], 1

</llo_original>
